<compile_context>
chip_gen: v6e
topology: v6e:2x2x1
jax: 0.10.0
libtpu: 0.0.40
codegen_flags: <defaults>
</compile_context>

<pallas_src>
import functools

import jax
import jax.numpy as jnp
from jax.experimental import pallas as pl
from jax.experimental.pallas import tpu as pltpu

LN_EPS = 1e-5      # torch.nn.LayerNorm default eps
L2_EPS = 1e-12     # torch.nn.functional.normalize default eps


def _retrieval_head_kernel(x_ref,
                           g1_ref, be1_ref,      # RetrievalHead.norm (outer LN)
                           w1_ref, b1_ref,       # Residual.fc1, (D, TH) tile (bf16 W)
                           w2_ref, b2_ref,       # Residual.fc2, (TH, D) tile (bf16 W)
                           g2_ref, be2_ref,      # Residual.norm
                           o_ref,
                           xn_sc, acc_sc):
    j = pl.program_id(1)

    # ---- first hidden tile of this batch tile: outer LayerNorm, init accumulator ----
    @pl.when(j == 0)
    def _():
        x = x_ref[...].astype(jnp.float32)
        mu = jnp.mean(x, axis=-1, keepdims=True)
        var = jnp.mean((x - mu) * (x - mu), axis=-1, keepdims=True)
        xn = (x - mu) * jax.lax.rsqrt(var + LN_EPS)
        xn_sc[...] = xn * g1_ref[...] + be1_ref[...]
        acc_sc[...] = jnp.zeros_like(acc_sc)

    # ---- partial MLP for this hidden tile: relu(xn @ w1[:, j] + b1[j]) @ w2[j, :] ----
    # bf16 operands on the MXU, f32 accumulation.
    xn_bf = xn_sc[...].astype(jnp.bfloat16)
    h = jnp.dot(xn_bf, w1_ref[...], preferred_element_type=jnp.float32)
    h = jnp.maximum(h + b1_ref[...], 0.0)
    acc_sc[...] += jnp.dot(h.astype(jnp.bfloat16), w2_ref[...],
                           preferred_element_type=jnp.float32)

    # ---- last hidden tile: residual add, Residual.norm, F.normalize ----
    @pl.when(j == pl.num_programs(1) - 1)
    def _():
        y = xn_sc[...] + acc_sc[...] + b2_ref[...]
        mu2 = jnp.mean(y, axis=-1, keepdims=True)
        var2 = jnp.mean((y - mu2) * (y - mu2), axis=-1, keepdims=True)
        yn = (y - mu2) * jax.lax.rsqrt(var2 + LN_EPS)
        yn = yn * g2_ref[...] + be2_ref[...]
        nrm = jnp.sqrt(jnp.sum(yn * yn, axis=-1, keepdims=True))
        o_ref[...] = (yn / jnp.maximum(nrm, L2_EPS)).astype(o_ref.dtype)


def _round_up(v, m):
    return -(-v // m) * m


def _pick_hidden_tile(H, block_h):
    """Largest lane-aligned divisor of H that is <= block_h (falls back to H)."""
    if H <= block_h:
        return H
    th = (min(block_h, H) // 128) * 128
    while th >= 128:
        if H % th == 0:
            return th
        th -= 128
    return H


@functools.partial(jax.jit, static_argnames=("block_b", "block_h"))
def retrieval_head(x, params, block_b=256, block_h=1024):
    """x: (B, D) float32. params: dict of weights (see make_params)."""
    B, D = x.shape
    H = params["w1"].shape[1]

    # batch tile: multiple of 8 (f32 sublane), clamped to the (padded) batch size
    bb = min(block_b, _round_up(B, 8))
    bb = max(8, (bb // 8) * 8)
    Bp = _round_up(B, bb)

    # hidden tile: divides H exactly, lane-aligned (or covers all of H)
    th = _pick_hidden_tile(H, block_h)

    xp = x if Bp == B else jnp.pad(x, ((0, Bp - B), (0, 0)))

    # stream MLP weights as bf16 (f32 accumulation in-kernel)
    w1 = params["w1"].astype(jnp.bfloat16)
    w2 = params["w2"].astype(jnp.bfloat16)

    grid = (Bp // bb, H // th)

    grid_spec = pltpu.PrefetchScalarGridSpec(
        num_scalar_prefetch=0,
        grid=grid,
        in_specs=[
            pl.BlockSpec((bb, D), lambda i, j: (i, 0)),    # x tile
            pl.BlockSpec((1, D), lambda i, j: (0, 0)),     # outer LN gamma
            pl.BlockSpec((1, D), lambda i, j: (0, 0)),     # outer LN beta
            pl.BlockSpec((D, th), lambda i, j: (0, j)),    # fc1 W tile
            pl.BlockSpec((1, th), lambda i, j: (0, j)),    # fc1 b tile
            pl.BlockSpec((th, D), lambda i, j: (j, 0)),    # fc2 W tile
            pl.BlockSpec((1, D), lambda i, j: (0, 0)),     # fc2 b
            pl.BlockSpec((1, D), lambda i, j: (0, 0)),     # residual LN gamma
            pl.BlockSpec((1, D), lambda i, j: (0, 0)),     # residual LN beta
        ],
        out_specs=pl.BlockSpec((bb, D), lambda i, j: (i, 0)),
        scratch_shapes=[
            pltpu.VMEM((bb, D), jnp.float32),   # xn (post outer-LN activations)
            pltpu.VMEM((bb, D), jnp.float32),   # MLP output accumulator
        ],
    )

    out = pl.pallas_call(
        _retrieval_head_kernel,
        out_shape=jax.ShapeDtypeStruct((Bp, D), x.dtype),
        grid_spec=grid_spec,
        compiler_params=pltpu.CompilerParams(
            dimension_semantics=("parallel", "arbitrary"),
            vmem_limit_bytes=64 * 1024 * 1024),
    )(xp,
      params["ln1_g"], params["ln1_b"],
      w1, params["b1"],
      w2, params["b2"],
      params["ln2_g"], params["ln2_b"])

    return out[:B] if Bp != B else out


def make_params(key, dims, hidden_dims):
    k1, k2, k3, k4 = jax.random.split(key, 4)
    scale1 = 1.0 / jnp.sqrt(dims)
    scale2 = 1.0 / jnp.sqrt(hidden_dims)
    return {
        # RetrievalHead.norm
        "ln1_g": jnp.ones((1, dims), jnp.float32),
        "ln1_b": jnp.zeros((1, dims), jnp.float32),
        # Residual.fc1 : Linear(dims -> hidden_dims), stored as (in, out)
        "w1": jax.random.uniform(k1, (dims, hidden_dims), jnp.float32,
                                 -scale1, scale1),
        "b1": jax.random.uniform(k2, (1, hidden_dims), jnp.float32,
                                 -scale1, scale1),
        # Residual.fc2 : Linear(hidden_dims -> dims)
        "w2": jax.random.uniform(k3, (hidden_dims, dims), jnp.float32,
                                 -scale2, scale2),
        "b2": jax.random.uniform(k4, (1, dims), jnp.float32,
                                 -scale2, scale2),
        # Residual.norm
        "ln2_g": jnp.ones((1, dims), jnp.float32),
        "ln2_b": jnp.zeros((1, dims), jnp.float32),
    }


def _reference(x, p):
    """Pure-JAX reference mirroring the PyTorch forward (bf16-rounded weights)."""
    def ln(v, g, b):
        mu = jnp.mean(v, axis=-1, keepdims=True)
        var = jnp.mean((v - mu) ** 2, axis=-1, keepdims=True)
        return (v - mu) * jax.lax.rsqrt(var + LN_EPS) * g + b

    w1 = p["w1"].astype(jnp.bfloat16).astype(jnp.float32)
    w2 = p["w2"].astype(jnp.bfloat16).astype(jnp.float32)
    x = ln(x, p["ln1_g"], p["ln1_b"])
    h = jnp.maximum(x @ w1 + p["b1"], 0.0)
    y = ln(x + h @ w2 + p["b2"], p["ln2_g"], p["ln2_b"])
    nrm = jnp.maximum(jnp.linalg.norm(y, axis=-1, keepdims=True), L2_EPS)
    return y / nrm


if __name__ == "__main__":
    # Small shapes consistent with the module (dims=1792, hidden=4096 scaled down).
    B, D, H = 256, 256, 512

    key = jax.random.PRNGKey(0)
    kx, kp = jax.random.split(key)
    x = jax.random.normal(kx, (B, D), jnp.float32)
    params = make_params(kp, D, H)

    # grid = (2 batch tiles, 2 hidden tiles) at these sizes
    out = retrieval_head(x, params, block_b=128, block_h=256)
    out = jax.block_until_ready(out)

    ref = _reference(x, params)
    assert out.shape == (B, D)
    assert jnp.allclose(out, ref, atol=2e-2, rtol=2e-2), "mismatch vs reference"
    assert jnp.allclose(jnp.linalg.norm(out, axis=-1), 1.0, atol=1e-4)

    # also exercise the small / ragged-batch padding path with default tiles
    x2 = jax.random.normal(kx, (20, D), jnp.float32)
    out2 = jax.block_until_ready(retrieval_head(x2, params))
    assert jnp.allclose(out2, _reference(x2, params), atol=2e-2, rtol=2e-2)

    print("KERNEL_OK")
</pallas_src>

<mosaic_0001>
module attributes {stable_mosaic.version = 11 : i64} {
  func.func @_retrieval_head_kernel(%arg0: i32, %arg1: i32, %arg2: memref<128x256xf32, #tpu.memory_space<vmem>>, %arg3: memref<1x256xf32, #tpu.memory_space<vmem>>, %arg4: memref<1x256xf32, #tpu.memory_space<vmem>>, %arg5: memref<256x256xbf16, #tpu.memory_space<vmem>>, %arg6: memref<1x256xf32, #tpu.memory_space<vmem>>, %arg7: memref<256x256xbf16, #tpu.memory_space<vmem>>, %arg8: memref<1x256xf32, #tpu.memory_space<vmem>>, %arg9: memref<1x256xf32, #tpu.memory_space<vmem>>, %arg10: memref<1x256xf32, #tpu.memory_space<vmem>>, %arg11: memref<128x256xf32, #tpu.memory_space<vmem>>, %arg12: memref<128x256xf32, #tpu.memory_space<vmem>>, %arg13: memref<128x256xf32, #tpu.memory_space<vmem>>) attributes {dimension_semantics = [#tpu.dimension_semantics<parallel>, #tpu.dimension_semantics<arbitrary>], iteration_bounds = array<i64: 2, 2>, scalar_prefetch = 0 : i64, scratch_operands = 2 : i64, tpu.core_type = #tpu.core_type<tc>, window_params = [{transform_indices = @transform_0, window_bounds = array<i64: 128, 256>}, {pipeline_mode = #tpu.pipeline_mode<synchronous>, transform_indices = @transform_1, window_bounds = array<i64: 1, 256>}, {pipeline_mode = #tpu.pipeline_mode<synchronous>, transform_indices = @transform_2, window_bounds = array<i64: 1, 256>}, {transform_indices = @transform_3, window_bounds = array<i64: 256, 256>}, {transform_indices = @transform_4, window_bounds = array<i64: 1, 256>}, {transform_indices = @transform_5, window_bounds = array<i64: 256, 256>}, {pipeline_mode = #tpu.pipeline_mode<synchronous>, transform_indices = @transform_6, window_bounds = array<i64: 1, 256>}, {pipeline_mode = #tpu.pipeline_mode<synchronous>, transform_indices = @transform_7, window_bounds = array<i64: 1, 256>}, {pipeline_mode = #tpu.pipeline_mode<synchronous>, transform_indices = @transform_8, window_bounds = array<i64: 1, 256>}, {transform_indices = @transform_9, window_bounds = array<i64: 128, 256>}]} {
    %c0_i32 = arith.constant 0 : i32
    %0 = arith.cmpi eq, %arg1, %c0_i32 : i32
    %1 = arith.extui %0 : i1 to i32
    %c0_i32_0 = arith.constant 0 : i32
    %2 = arith.cmpi ne, %1, %c0_i32_0 : i32
    scf.if %2 {
      %c0_15 = arith.constant 0 : index
      %c0_16 = arith.constant 0 : index
      %21 = vector.load %arg2[%c0_15, %c0_16] : memref<128x256xf32, #tpu.memory_space<vmem>>, vector<128x256xf32>
      %cst_17 = arith.constant dense<0.000000e+00> : vector<128xf32>
      %22 = vector.multi_reduction <add>, %21, %cst_17 [1] : vector<128x256xf32> to vector<128xf32>
      %23 = vector.shape_cast %22 : vector<128xf32> to vector<128x1xf32>
      %cst_18 = arith.constant 2.560000e+02 : f32
      %24 = vector.broadcast %cst_18 : f32 to vector<128x1xf32>
      %25 = arith.divf %23, %24 : vector<128x1xf32>
      %26 = vector.broadcast %25 : vector<128x1xf32> to vector<128x256xf32>
      %27 = arith.subf %21, %26 : vector<128x256xf32>
      %28 = vector.broadcast %25 : vector<128x1xf32> to vector<128x256xf32>
      %29 = arith.subf %21, %28 : vector<128x256xf32>
      %30 = arith.mulf %27, %29 : vector<128x256xf32>
      %cst_19 = arith.constant dense<0.000000e+00> : vector<128xf32>
      %31 = vector.multi_reduction <add>, %30, %cst_19 [1] : vector<128x256xf32> to vector<128xf32>
      %32 = vector.shape_cast %31 : vector<128xf32> to vector<128x1xf32>
      %cst_20 = arith.constant 2.560000e+02 : f32
      %33 = vector.broadcast %cst_20 : f32 to vector<128x1xf32>
      %34 = arith.divf %32, %33 : vector<128x1xf32>
      %35 = vector.broadcast %25 : vector<128x1xf32> to vector<128x256xf32>
      %36 = arith.subf %21, %35 : vector<128x256xf32>
      %cst_21 = arith.constant 9.99999974E-6 : f32
      %37 = vector.broadcast %cst_21 : f32 to vector<128x1xf32>
      %38 = arith.addf %34, %37 : vector<128x1xf32>
      %39 = math.rsqrt %38 : vector<128x1xf32>
      %40 = vector.broadcast %39 : vector<128x1xf32> to vector<128x256xf32>
      %41 = arith.mulf %36, %40 : vector<128x256xf32>
      %c0_22 = arith.constant 0 : index
      %c0_23 = arith.constant 0 : index
      %42 = vector.load %arg3[%c0_22, %c0_23] : memref<1x256xf32, #tpu.memory_space<vmem>>, vector<1x256xf32>
      %43 = vector.broadcast %42 : vector<1x256xf32> to vector<128x256xf32>
      %44 = arith.mulf %41, %43 : vector<128x256xf32>
      %c0_24 = arith.constant 0 : index
      %c0_25 = arith.constant 0 : index
      %45 = vector.load %arg4[%c0_24, %c0_25] : memref<1x256xf32, #tpu.memory_space<vmem>>, vector<1x256xf32>
      %46 = vector.broadcast %45 : vector<1x256xf32> to vector<128x256xf32>
      %47 = arith.addf %44, %46 : vector<128x256xf32>
      %c0_26 = arith.constant 0 : index
      %c0_27 = arith.constant 0 : index
      %48 = vector.load %arg12[%c0_26, %c0_27] : memref<128x256xf32, #tpu.memory_space<vmem>>, vector<128x256xf32>
      tpu.vector_store %arg12[%c0_26, %c0_27], %47 {strides = array<i32>} : memref<128x256xf32, #tpu.memory_space<vmem>>, vector<128x256xf32>,
      %cst_28 = arith.constant 0.000000e+00 : f32
      %49 = vector.broadcast %cst_28 : f32 to vector<128x256xf32>
      %c0_29 = arith.constant 0 : index
      %c0_30 = arith.constant 0 : index
      %50 = vector.load %arg13[%c0_29, %c0_30] : memref<128x256xf32, #tpu.memory_space<vmem>>, vector<128x256xf32>
      tpu.vector_store %arg13[%c0_29, %c0_30], %49 {strides = array<i32>} : memref<128x256xf32, #tpu.memory_space<vmem>>, vector<128x256xf32>,
    } else {
    }
    %c0 = arith.constant 0 : index
    %c0_1 = arith.constant 0 : index
    %3 = vector.load %arg12[%c0, %c0_1] : memref<128x256xf32, #tpu.memory_space<vmem>>, vector<128x256xf32>
    %4 = arith.truncf %3 : vector<128x256xf32> to vector<128x256xbf16>
    %c0_2 = arith.constant 0 : index
    %c0_3 = arith.constant 0 : index
    %5 = vector.load %arg5[%c0_2, %c0_3] : memref<256x256xbf16, #tpu.memory_space<vmem>>, vector<256x256xbf16>
    %cst = arith.constant dense<0.000000e+00> : vector<128x256xf32>
    %6 = tpu.matmul %4, %5, %cst {dimension_numbers = #tpu.dot_dimension_numbers<[1], [0], [0], [1], [0, 0, 1, 1], [], []>} : vector<128x256xbf16>, vector<256x256xbf16>, vector<128x256xf32> -> vector<128x256xf32>
    %c0_4 = arith.constant 0 : index
    %c0_5 = arith.constant 0 : index
    %7 = vector.load %arg6[%c0_4, %c0_5] : memref<1x256xf32, #tpu.memory_space<vmem>>, vector<1x256xf32>
    %8 = vector.broadcast %7 : vector<1x256xf32> to vector<128x256xf32>
    %9 = arith.addf %6, %8 : vector<128x256xf32>
    %cst_6 = arith.constant 0.000000e+00 : f32
    %10 = vector.broadcast %cst_6 : f32 to vector<128x256xf32>
    %11 = arith.maximumf %9, %10 : vector<128x256xf32>
    %c0_7 = arith.constant 0 : index
    %c0_8 = arith.constant 0 : index
    %12 = vector.load %arg13[%c0_7, %c0_8] : memref<128x256xf32, #tpu.memory_space<vmem>>, vector<128x256xf32>
    %13 = arith.truncf %11 : vector<128x256xf32> to vector<128x256xbf16>
    %c0_9 = arith.constant 0 : index
    %c0_10 = arith.constant 0 : index
    %14 = vector.load %arg7[%c0_9, %c0_10] : memref<256x256xbf16, #tpu.memory_space<vmem>>, vector<256x256xbf16>
    %cst_11 = arith.constant dense<0.000000e+00> : vector<128x256xf32>
    %15 = tpu.matmul %13, %14, %cst_11 {dimension_numbers = #tpu.dot_dimension_numbers<[1], [0], [0], [1], [0, 0, 1, 1], [], []>} : vector<128x256xbf16>, vector<256x256xbf16>, vector<128x256xf32> -> vector<128x256xf32>
    %16 = arith.addf %12, %15 : vector<128x256xf32>
    %c0_12 = arith.constant 0 : index
    %c0_13 = arith.constant 0 : index
    %17 = vector.load %arg13[%c0_12, %c0_13] : memref<128x256xf32, #tpu.memory_space<vmem>>, vector<128x256xf32>
    tpu.vector_store %arg13[%c0_12, %c0_13], %16 {strides = array<i32>} : memref<128x256xf32, #tpu.memory_space<vmem>>, vector<128x256xf32>,
    %c1_i32 = arith.constant 1 : i32
    %18 = arith.cmpi eq, %arg1, %c1_i32 : i32
    %19 = arith.extui %18 : i1 to i32
    %c0_i32_14 = arith.constant 0 : i32
    %20 = arith.cmpi ne, %19, %c0_i32_14 : i32
    scf.if %20 {
      %c0_15 = arith.constant 0 : index
      %c0_16 = arith.constant 0 : index
      %21 = vector.load %arg12[%c0_15, %c0_16] : memref<128x256xf32, #tpu.memory_space<vmem>>, vector<128x256xf32>
      %c0_17 = arith.constant 0 : index
      %c0_18 = arith.constant 0 : index
      %22 = vector.load %arg13[%c0_17, %c0_18] : memref<128x256xf32, #tpu.memory_space<vmem>>, vector<128x256xf32>
      %23 = arith.addf %21, %22 : vector<128x256xf32>
      %c0_19 = arith.constant 0 : index
      %c0_20 = arith.constant 0 : index
      %24 = vector.load %arg8[%c0_19, %c0_20] : memref<1x256xf32, #tpu.memory_space<vmem>>, vector<1x256xf32>
      %25 = vector.broadcast %24 : vector<1x256xf32> to vector<128x256xf32>
      %26 = arith.addf %23, %25 : vector<128x256xf32>
      %cst_21 = arith.constant dense<0.000000e+00> : vector<128xf32>
      %27 = vector.multi_reduction <add>, %26, %cst_21 [1] : vector<128x256xf32> to vector<128xf32>
      %28 = vector.shape_cast %27 : vector<128xf32> to vector<128x1xf32>
      %cst_22 = arith.constant 2.560000e+02 : f32
      %29 = vector.broadcast %cst_22 : f32 to vector<128x1xf32>
      %30 = arith.divf %28, %29 : vector<128x1xf32>
      %31 = vector.broadcast %30 : vector<128x1xf32> to vector<128x256xf32>
      %32 = arith.subf %26, %31 : vector<128x256xf32>
      %33 = vector.broadcast %30 : vector<128x1xf32> to vector<128x256xf32>
      %34 = arith.subf %26, %33 : vector<128x256xf32>
      %35 = arith.mulf %32, %34 : vector<128x256xf32>
      %cst_23 = arith.constant dense<0.000000e+00> : vector<128xf32>
      %36 = vector.multi_reduction <add>, %35, %cst_23 [1] : vector<128x256xf32> to vector<128xf32>
      %37 = vector.shape_cast %36 : vector<128xf32> to vector<128x1xf32>
      %cst_24 = arith.constant 2.560000e+02 : f32
      %38 = vector.broadcast %cst_24 : f32 to vector<128x1xf32>
      %39 = arith.divf %37, %38 : vector<128x1xf32>
      %40 = vector.broadcast %30 : vector<128x1xf32> to vector<128x256xf32>
      %41 = arith.subf %26, %40 : vector<128x256xf32>
      %cst_25 = arith.constant 9.99999974E-6 : f32
      %42 = vector.broadcast %cst_25 : f32 to vector<128x1xf32>
      %43 = arith.addf %39, %42 : vector<128x1xf32>
      %44 = math.rsqrt %43 : vector<128x1xf32>
      %45 = vector.broadcast %44 : vector<128x1xf32> to vector<128x256xf32>
      %46 = arith.mulf %41, %45 : vector<128x256xf32>
      %c0_26 = arith.constant 0 : index
      %c0_27 = arith.constant 0 : index
      %47 = vector.load %arg9[%c0_26, %c0_27] : memref<1x256xf32, #tpu.memory_space<vmem>>, vector<1x256xf32>
      %48 = vector.broadcast %47 : vector<1x256xf32> to vector<128x256xf32>
      %49 = arith.mulf %46, %48 : vector<128x256xf32>
      %c0_28 = arith.constant 0 : index
      %c0_29 = arith.constant 0 : index
      %50 = vector.load %arg10[%c0_28, %c0_29] : memref<1x256xf32, #tpu.memory_space<vmem>>, vector<1x256xf32>
      %51 = vector.broadcast %50 : vector<1x256xf32> to vector<128x256xf32>
      %52 = arith.addf %49, %51 : vector<128x256xf32>
      %53 = arith.mulf %52, %52 : vector<128x256xf32>
      %cst_30 = arith.constant dense<0.000000e+00> : vector<128xf32>
      %54 = vector.multi_reduction <add>, %53, %cst_30 [1] : vector<128x256xf32> to vector<128xf32>
      %55 = vector.shape_cast %54 : vector<128xf32> to vector<128x1xf32>
      %56 = math.sqrt %55 : vector<128x1xf32>
      %cst_31 = arith.constant 9.99999996E-13 : f32
      %57 = vector.broadcast %cst_31 : f32 to vector<128x1xf32>
      %58 = arith.maximumf %56, %57 : vector<128x1xf32>
      %59 = vector.broadcast %58 : vector<128x1xf32> to vector<128x256xf32>
      %60 = arith.divf %52, %59 : vector<128x256xf32>
      %c0_32 = arith.constant 0 : index
      %c0_33 = arith.constant 0 : index
      %61 = vector.load %arg11[%c0_32, %c0_33] : memref<128x256xf32, #tpu.memory_space<vmem>>, vector<128x256xf32>
      tpu.vector_store %arg11[%c0_32, %c0_33], %60 {strides = array<i32>} : memref<128x256xf32, #tpu.memory_space<vmem>>, vector<128x256xf32>,
    } else {
    }
    return
  }
  func.func @transform_0(%arg0: i32, %arg1: i32) -> (i32, i32) {
    %c0_i32 = arith.constant 0 : i32
    %c0_i32_0 = arith.constant 0 : i32
    return %arg0, %c0_i32 : i32, i32
  }
  func.func @transform_1(%arg0: i32, %arg1: i32) -> (i32, i32) {
    %c0_i32 = arith.constant 0 : i32
    %c0_i32_0 = arith.constant 0 : i32
    %c0_i32_1 = arith.constant 0 : i32
    return %c0_i32, %c0_i32_0 : i32, i32
  }
  func.func @transform_2(%arg0: i32, %arg1: i32) -> (i32, i32) {
    %c0_i32 = arith.constant 0 : i32
    %c0_i32_0 = arith.constant 0 : i32
    %c0_i32_1 = arith.constant 0 : i32
    return %c0_i32, %c0_i32_0 : i32, i32
  }
  func.func @transform_3(%arg0: i32, %arg1: i32) -> (i32, i32) {
    %c0_i32 = arith.constant 0 : i32
    %c0_i32_0 = arith.constant 0 : i32
    return %c0_i32, %arg1 : i32, i32
  }
  func.func @transform_4(%arg0: i32, %arg1: i32) -> (i32, i32) {
    %c0_i32 = arith.constant 0 : i32
    %c0_i32_0 = arith.constant 0 : i32
    return %c0_i32, %arg1 : i32, i32
  }
  func.func @transform_5(%arg0: i32, %arg1: i32) -> (i32, i32) {
    %c0_i32 = arith.constant 0 : i32
    %c0_i32_0 = arith.constant 0 : i32
    return %arg1, %c0_i32 : i32, i32
  }
  func.func @transform_6(%arg0: i32, %arg1: i32) -> (i32, i32) {
    %c0_i32 = arith.constant 0 : i32
    %c0_i32_0 = arith.constant 0 : i32
    %c0_i32_1 = arith.constant 0 : i32
    return %c0_i32, %c0_i32_0 : i32, i32
  }
  func.func @transform_7(%arg0: i32, %arg1: i32) -> (i32, i32) {
    %c0_i32 = arith.constant 0 : i32
    %c0_i32_0 = arith.constant 0 : i32
    %c0_i32_1 = arith.constant 0 : i32
    return %c0_i32, %c0_i32_0 : i32, i32
  }
  func.func @transform_8(%arg0: i32, %arg1: i32) -> (i32, i32) {
    %c0_i32 = arith.constant 0 : i32
    %c0_i32_0 = arith.constant 0 : i32
    %c0_i32_1 = arith.constant 0 : i32
    return %c0_i32, %c0_i32_0 : i32, i32
  }
  func.func @transform_9(%arg0: i32, %arg1: i32) -> (i32, i32) {
    %c0_i32 = arith.constant 0 : i32
    %c0_i32_0 = arith.constant 0 : i32
    return %arg0, %c0_i32 : i32, i32
  }
}

</mosaic_0001>

<llo_original>
// kernel: retrieval_head.1
$region0: #{retrieval_head.1}
  #allocation0 [shape = 'u32[]', space=smem, size = 0x4, offset = 0x4, fixed_abs, tag = 'smem constant byte address 0x4 - core index']
  #allocation1 [shape = 'u32[144,128]{1,0:T(1,128)}', space=vmem, size = 0x12000, scoped, tag = 'internal scratch']
  #allocation2 [shape = 'f32[128,256]{1,0:T(8,128)}', space=vmem, size = 0x20000, scoped, tag = 'scratch operand']
  #allocation3 [shape = 'f32[128,256]{1,0:T(8,128)}', space=vmem, size = 0x20000, scoped, tag = 'scratch operand']
  %s0 = inlined_call_operand.vmem [shape: f32[256,256], index: 0, kind: input, shape index: {}]
  %s1 = inlined_call_operand.vmem [shape: f32[1,256], index: 1, kind: input, shape index: {}]
  %s2 = inlined_call_operand.vmem [shape: f32[1,256], index: 2, kind: input, shape index: {}]
  %s3 = inlined_call_operand.vmem [shape: bf16[256,512], index: 3, kind: input, shape index: {}]
  %s4 = inlined_call_operand.vmem [shape: f32[1,512], index: 4, kind: input, shape index: {}]
  %s5 = inlined_call_operand.vmem [shape: bf16[512,256], index: 5, kind: input, shape index: {}]
  %s6 = inlined_call_operand.vmem [shape: f32[1,256], index: 6, kind: input, shape index: {}]
  %s7 = inlined_call_operand.vmem [shape: f32[1,256], index: 7, kind: input, shape index: {}]
  %s8 = inlined_call_operand.vmem [shape: f32[1,256], index: 8, kind: input, shape index: {}]
  %s9 = inlined_call_operand.hbm [shape: f32[256,256], index: 9, kind: output, shape index: {}]
  %s10 = sld [smem:[#allocation0]]
  $region115: #{retrieval_head.1} parent=0
    _
  %s12 = ssub.s32 1, %s10
  %s13 = scalar_select 0, %s12, %s10
  $region1: #{retrieval_head.1} parent=0
    #allocation4 [shape = 'u8[262144]{0}', space=vmem, size = 0x40000, scoped, tag = 'input window, operand 3']
    #allocation5 [shape = 'u8[262144]{0}', space=vmem, size = 0x40000, scoped, tag = 'output window, operand 0']
    #allocation6 [shape = 's32[2]{0}', space=sflag, size = 0x8, scoped, tag = 'scoped memory for retrieval_head.1']
    %14 = vsyncpa [#allocation6], 0
    %s15 = scalar_lea.sflag [#allocation6], 1
    %16 = vsyncpa %s15, 0
    loop: start=0, step=1, limit=6
    $region2: #{retrieval_head.1} parent=1 // loop_pre_header
      _
    $region3: #{retrieval_head.1} parent=1 // loop_header
      %s18 = sphi 0, %s22
      %p19 = scmp.ge.s32.totalorder %s18, 6
      %s25 = sphi 0, %s37
      %s26 = sphi 0, %s33
      %s27 = sphi 0, %s25
      %s28 = sphi 0, %s26
      %s29 = sphi 0, %s27
      %s30 = sphi 0, %s28
      %s40 = sphi 0, %s42
      %s43 = sphi 0, %s40
      %s44 = sphi 0, %s43
      %s60 = sphi 0, %s44
      %s64 = sphi 0, %s64
      %s66 = sphi 0, %s64
      %s67 = sphi 0, %s66
      %s81 = sphi 0, %s67
      %s85 = sphi 0, %s85
      %s87 = sphi 0, %s85
      %s88 = sphi 0, %s87
      %s102 = sphi 0, %s88
      %s108 = sphi 0, %s110
      %s111 = sphi 0, %s108
      %s112 = sphi 0, %s111
      %s128 = sphi 0, %s112
      %s134 = sphi 0, %s136
      %s137 = sphi 0, %s134
      %s138 = sphi 0, %s137
      %s154 = sphi 0, %s138
      %s160 = sphi 0, %s162
      %s163 = sphi 0, %s160
      %s164 = sphi 0, %s163
      %s180 = sphi 0, %s164
      %s184 = sphi 0, %s184
      %s186 = sphi 0, %s184
      %s187 = sphi 0, %s186
      %s201 = sphi 0, %s187
      %s205 = sphi 0, %s205
      %s207 = sphi 0, %s205
      %s208 = sphi 0, %s207
      %s222 = sphi 0, %s208
      %s226 = sphi 0, %s226
      %s228 = sphi 0, %s226
      %s229 = sphi 0, %s228
      %s243 = sphi 0, %s229
      %s249 = sphi 0, %s251
      %s252 = sphi 0, %s249
      %s253 = sphi 0, %s252
      %s269 = sphi 0, %s253
    $region4: #{retrieval_head.1} parent=1 // loop_header_branch
      %21 = sbr.rel (%p19) target = $region8
    $region5: #{retrieval_head.1} parent=1 // loop_body
      %s23 = ssub.s32 %s18, 1
      %s24 = ssub.s32 %s18, 2
      %s31 = sadd.s32 1, %s26
      %p32 = scmp.ge.s32.totalorder %s31, 2
      %s33 = scalar_select %p32, 0, %s31
      %s34 = sadd.s32 1, %s25
      %s35 = scalar_select %p32, %s34, %s25
      %p36 = scmp.ge.s32.totalorder %s35, 2
      %s37 = scalar_select %p36, 0, %s35
      %s38 = ssub.s32 %s25, %s37
      %p39 = scmp.eq.s32.totalorder %s38, 0
      %s41 = sadd.s32 %s40, 1
      %s42 = scalar_select %p39, %s40, %s41
      %p45 = pneg %p39
      %p46 = scmp.eq.s32.totalorder %s18, 3
      %p47 = por %p45, %p46
      %p48 = scmp.ne.s32.totalorder %s40, %s43
      %p49 = scmp.eq.s32.totalorder %s18, 0
      %p50 = por %p48, %p49
      %p51 = scmp.ne.s32.totalorder %s40, %s43
      %p52 = scmp.eq.s32.totalorder %s23, 3
      %p53 = por %p51, %p52
      %p54 = scmp.ne.s32.totalorder %s43, %s44
      %p55 = scmp.eq.s32.totalorder %s23, 0
      %p56 = por %p54, %p55
      %p57 = scmp.ne.s32.totalorder %s43, %s44
      %p58 = scmp.eq.s32.totalorder %s24, 3
      %p59 = por %p57, %p58
      %p61 = scmp.ne.s32.totalorder %s44, %s60
      %p62 = scmp.eq.s32.totalorder %s24, 0
      %p63 = por %p61, %p62
      %s65 = sadd.s32 %s64, 1
      %p68 = scmp.eq.s32.totalorder %s18, 3
      %p69 = scmp.ne.s32.totalorder %s64, %s66
      %p70 = scmp.eq.s32.totalorder %s18, 0
      %p71 = por %p69, %p70
      %p72 = scmp.ne.s32.totalorder %s64, %s66
      %p73 = scmp.eq.s32.totalorder %s23, 3
      %p74 = por %p72, %p73
      %p75 = scmp.ne.s32.totalorder %s66, %s67
      %p76 = scmp.eq.s32.totalorder %s23, 0
      %p77 = por %p75, %p76
      %p78 = scmp.ne.s32.totalorder %s66, %s67
      %p79 = scmp.eq.s32.totalorder %s24, 3
      %p80 = por %p78, %p79
      %p82 = scmp.ne.s32.totalorder %s67, %s81
      %p83 = scmp.eq.s32.totalorder %s24, 0
      %p84 = por %p82, %p83
      %s86 = sadd.s32 %s85, 1
      %p89 = scmp.eq.s32.totalorder %s18, 3
      %p90 = scmp.ne.s32.totalorder %s85, %s87
      %p91 = scmp.eq.s32.totalorder %s18, 0
      %p92 = por %p90, %p91
      %p93 = scmp.ne.s32.totalorder %s85, %s87
      %p94 = scmp.eq.s32.totalorder %s23, 3
      %p95 = por %p93, %p94
      %p96 = scmp.ne.s32.totalorder %s87, %s88
      %p97 = scmp.eq.s32.totalorder %s23, 0
      %p98 = por %p96, %p97
      %p99 = scmp.ne.s32.totalorder %s87, %s88
      %p100 = scmp.eq.s32.totalorder %s24, 3
      %p101 = por %p99, %p100
      %p103 = scmp.ne.s32.totalorder %s88, %s102
      %p104 = scmp.eq.s32.totalorder %s24, 0
      %p105 = por %p103, %p104
      %s106 = ssub.s32 %s26, %s33
      %p107 = scmp.eq.s32.totalorder %s106, 0
      %s109 = sadd.s32 %s108, 1
      %s110 = scalar_select %p107, %s108, %s109
      %p113 = pneg %p107
      %p114 = scmp.eq.s32.totalorder %s18, 3
      %p115 = por %p113, %p114
      %p116 = scmp.ne.s32.totalorder %s108, %s111
      %p117 = scmp.eq.s32.totalorder %s18, 0
      %p118 = por %p116, %p117
      %p119 = scmp.ne.s32.totalorder %s108, %s111
      %p120 = scmp.eq.s32.totalorder %s23, 3
      %p121 = por %p119, %p120
      %p122 = scmp.ne.s32.totalorder %s111, %s112
      %p123 = scmp.eq.s32.totalorder %s23, 0
      %p124 = por %p122, %p123
      %p125 = scmp.ne.s32.totalorder %s111, %s112
      %p126 = scmp.eq.s32.totalorder %s24, 3
      %p127 = por %p125, %p126
      %p129 = scmp.ne.s32.totalorder %s112, %s128
      %p130 = scmp.eq.s32.totalorder %s24, 0
      %p131 = por %p129, %p130
      %s132 = ssub.s32 %s26, %s33
      %p133 = scmp.eq.s32.totalorder %s132, 0
      %s135 = sadd.s32 %s134, 1
      %s136 = scalar_select %p133, %s134, %s135
      %p139 = pneg %p133
      %p140 = scmp.eq.s32.totalorder %s18, 3
      %p141 = por %p139, %p140
      %p142 = scmp.ne.s32.totalorder %s134, %s137
      %p143 = scmp.eq.s32.totalorder %s18, 0
      %p144 = por %p142, %p143
      %p145 = scmp.ne.s32.totalorder %s134, %s137
      %p146 = scmp.eq.s32.totalorder %s23, 3
      %p147 = por %p145, %p146
      %p148 = scmp.ne.s32.totalorder %s137, %s138
      %p149 = scmp.eq.s32.totalorder %s23, 0
      %p150 = por %p148, %p149
      %p151 = scmp.ne.s32.totalorder %s137, %s138
      %p152 = scmp.eq.s32.totalorder %s24, 3
      %p153 = por %p151, %p152
      %p155 = scmp.ne.s32.totalorder %s138, %s154
      %p156 = scmp.eq.s32.totalorder %s24, 0
      %p157 = por %p155, %p156
      %s158 = ssub.s32 %s26, %s33
      %p159 = scmp.eq.s32.totalorder %s158, 0
      %s161 = sadd.s32 %s160, 1
      %s162 = scalar_select %p159, %s160, %s161
      %p165 = pneg %p159
      %p166 = scmp.eq.s32.totalorder %s18, 3
      %p167 = por %p165, %p166
      %p168 = scmp.ne.s32.totalorder %s160, %s163
      %p169 = scmp.eq.s32.totalorder %s18, 0
      %p170 = por %p168, %p169
      %p171 = scmp.ne.s32.totalorder %s160, %s163
      %p172 = scmp.eq.s32.totalorder %s23, 3
      %p173 = por %p171, %p172
      %p174 = scmp.ne.s32.totalorder %s163, %s164
      %p175 = scmp.eq.s32.totalorder %s23, 0
      %p176 = por %p174, %p175
      %p177 = scmp.ne.s32.totalorder %s163, %s164
      %p178 = scmp.eq.s32.totalorder %s24, 3
      %p179 = por %p177, %p178
      %p181 = scmp.ne.s32.totalorder %s164, %s180
      %p182 = scmp.eq.s32.totalorder %s24, 0
      %p183 = por %p181, %p182
      %s185 = sadd.s32 %s184, 1
      %p188 = scmp.eq.s32.totalorder %s18, 3
      %p189 = scmp.ne.s32.totalorder %s184, %s186
      %p190 = scmp.eq.s32.totalorder %s18, 0
      %p191 = por %p189, %p190
      %p192 = scmp.ne.s32.totalorder %s184, %s186
      %p193 = scmp.eq.s32.totalorder %s23, 3
      %p194 = por %p192, %p193
      %p195 = scmp.ne.s32.totalorder %s186, %s187
      %p196 = scmp.eq.s32.totalorder %s23, 0
      %p197 = por %p195, %p196
      %p198 = scmp.ne.s32.totalorder %s186, %s187
      %p199 = scmp.eq.s32.totalorder %s24, 3
      %p200 = por %p198, %p199
      %p202 = scmp.ne.s32.totalorder %s187, %s201
      %p203 = scmp.eq.s32.totalorder %s24, 0
      %p204 = por %p202, %p203
      %s206 = sadd.s32 %s205, 1
      %p209 = scmp.eq.s32.totalorder %s18, 3
      %p210 = scmp.ne.s32.totalorder %s205, %s207
      %p211 = scmp.eq.s32.totalorder %s18, 0
      %p212 = por %p210, %p211
      %p213 = scmp.ne.s32.totalorder %s205, %s207
      %p214 = scmp.eq.s32.totalorder %s23, 3
      %p215 = por %p213, %p214
      %p216 = scmp.ne.s32.totalorder %s207, %s208
      %p217 = scmp.eq.s32.totalorder %s23, 0
      %p218 = por %p216, %p217
      %p219 = scmp.ne.s32.totalorder %s207, %s208
      %p220 = scmp.eq.s32.totalorder %s24, 3
      %p221 = por %p219, %p220
      %p223 = scmp.ne.s32.totalorder %s208, %s222
      %p224 = scmp.eq.s32.totalorder %s24, 0
      %p225 = por %p223, %p224
      %s227 = sadd.s32 %s226, 1
      %p230 = scmp.eq.s32.totalorder %s18, 3
      %p231 = scmp.ne.s32.totalorder %s226, %s228
      %p232 = scmp.eq.s32.totalorder %s18, 0
      %p233 = por %p231, %p232
      %p234 = scmp.ne.s32.totalorder %s226, %s228
      %p235 = scmp.eq.s32.totalorder %s23, 3
      %p236 = por %p234, %p235
      %p237 = scmp.ne.s32.totalorder %s228, %s229
      %p238 = scmp.eq.s32.totalorder %s23, 0
      %p239 = por %p237, %p238
      %p240 = scmp.ne.s32.totalorder %s228, %s229
      %p241 = scmp.eq.s32.totalorder %s24, 3
      %p242 = por %p240, %p241
      %p244 = scmp.ne.s32.totalorder %s229, %s243
      %p245 = scmp.eq.s32.totalorder %s24, 0
      %p246 = por %p244, %p245
      %s247 = ssub.s32 %s25, %s37
      %p248 = scmp.eq.s32.totalorder %s247, 0
      %s250 = sadd.s32 %s249, 1
      %s251 = scalar_select %p248, %s249, %s250
      %p254 = pneg %p248
      %p255 = scmp.eq.s32.totalorder %s18, 3
      %p256 = por %p254, %p255
      %p257 = scmp.ne.s32.totalorder %s249, %s252
      %p258 = scmp.eq.s32.totalorder %s18, 0
      %p259 = por %p257, %p258
      %p260 = scmp.ne.s32.totalorder %s249, %s252
      %p261 = scmp.eq.s32.totalorder %s23, 3
      %p262 = por %p260, %p261
      %p263 = scmp.ne.s32.totalorder %s252, %s253
      %p264 = scmp.eq.s32.totalorder %s23, 0
      %p265 = por %p263, %p264
      %p266 = scmp.ne.s32.totalorder %s252, %s253
      %p267 = scmp.eq.s32.totalorder %s24, 3
      %p268 = por %p266, %p267
      %p270 = scmp.ne.s32.totalorder %s253, %s269
      %p271 = scmp.eq.s32.totalorder %s24, 0
      %p272 = por %p270, %p271
      %p273 = scmp.le.s32.totalorder 1, %s18
      %p274 = scmp.lt.s32.totalorder %s18, 5
      %p275 = pnand %p273, %p274
      %p276 = pneg %p275
      // Predicated region
      $region9: #{retrieval_head.1} parent=5 // pred_check
        _
      $region10: #{retrieval_head.1} parent=5 // pred_check_branch
        %278 = sbr.rel (%p275) target = $region12
      $region11: #{retrieval_head.1} parent=5 // pred_region
        %s279 = ssub.s32 %s18, 1
        // Predicated region
        $region13: #{retrieval_head.1} parent=11 // pred_check
          %p280 = pneg %p77
        $region14: #{retrieval_head.1} parent=11 // pred_check_branch
          %282 = sbr.rel (%p280) target = $region16
        $region15: #{retrieval_head.1} parent=11 // pred_region
          _
        $region16: #{retrieval_head.1} parent=11 // pred_fallthru
          _
        // Predicated region
        $region17: #{retrieval_head.1} parent=11 // pred_check
          %p283 = pneg %p98
        $region18: #{retrieval_head.1} parent=11 // pred_check_branch
          %285 = sbr.rel (%p283) target = $region20
        $region19: #{retrieval_head.1} parent=11 // pred_region
          _
        $region20: #{retrieval_head.1} parent=11 // pred_fallthru
          _
        // Predicated region
        $region21: #{retrieval_head.1} parent=11 // pred_check
          %p286 = pneg %p197
        $region22: #{retrieval_head.1} parent=11 // pred_check_branch
          %288 = sbr.rel (%p286) target = $region24
        $region23: #{retrieval_head.1} parent=11 // pred_region
          _
        $region24: #{retrieval_head.1} parent=11 // pred_fallthru
          _
        // Predicated region
        $region25: #{retrieval_head.1} parent=11 // pred_check
          %p289 = pneg %p218
        $region26: #{retrieval_head.1} parent=11 // pred_check_branch
          %291 = sbr.rel (%p289) target = $region28
        $region27: #{retrieval_head.1} parent=11 // pred_region
          _
        $region28: #{retrieval_head.1} parent=11 // pred_fallthru
          _
        // Predicated region
        $region29: #{retrieval_head.1} parent=11 // pred_check
          %p292 = pneg %p239
        $region30: #{retrieval_head.1} parent=11 // pred_check_branch
          %294 = sbr.rel (%p292) target = $region32
        $region31: #{retrieval_head.1} parent=11 // pred_region
          _
        $region32: #{retrieval_head.1} parent=11 // pred_fallthru
          _
      $region12: #{retrieval_head.1} parent=5 // pred_fallthru
        _
      %p295 = scmp.lt.s32.totalorder %s18, 4
      // Predicated region
      $region33: #{retrieval_head.1} parent=5 // pred_check
        %p296 = pneg %p295
      $region34: #{retrieval_head.1} parent=5 // pred_check_branch
        %298 = sbr.rel (%p296) target = $region36
      $region35: #{retrieval_head.1} parent=5 // pred_region
        // Predicated region
        $region37: #{retrieval_head.1} parent=35 // pred_check
          %p299 = pneg %p50
        $region38: #{retrieval_head.1} parent=35 // pred_check_branch
          %301 = sbr.rel (%p299) target = $region40
        $region39: #{retrieval_head.1} parent=35 // pred_region
          %s302 = smul.u32 16, %s25
          %p303 = scmp.lt.s32.totalorder %s302, 31
          %s304 = scalar_select %p303, %s302, 31
          %s305 = smul.addr %s304, 2
          %s306 = smul.addr %s305, 8
          %s307 = scalar_lea.vmem %s0, %s306
          %s308 = smul.u32 16, %s25
        $region40: #{retrieval_head.1} parent=35 // pred_fallthru
          _
        // Predicated region
        $region41: #{retrieval_head.1} parent=35 // pred_check
          %p309 = pneg %p118
        $region42: #{retrieval_head.1} parent=35 // pred_check_branch
          %311 = sbr.rel (%p309) target = $region44
        $region43: #{retrieval_head.1} parent=35 // pred_region
          %s312 = sand.u32 %s108, 1
          %s313 = sand.u32 %s108, 1
          %s314 = smul.addr %s313, 256
          %s315 = scalar_lea.vmem [#allocation4], %s314
          %s316 = smul.u32 2, %s26
          %s317 = smul.addr %s316, 4
          %s318 = scalar_lea.vmem %s3, %s317
          // Predicated region
          $region45: #{retrieval_head.1} parent=43 // pred_check
            _
          $region46: #{retrieval_head.1} parent=43 // pred_check_branch
            %320 = sbr.rel (0) target = $region48
          $region47: #{retrieval_head.1} parent=43 // pred_region
            // Predicated region
            $region49: #{retrieval_head.1} parent=47 // pred_check
              _
            $region50: #{retrieval_head.1} parent=47 // pred_check_branch
              %322 = sbr.rel (0) target = $region52
            $region51: #{retrieval_head.1} parent=47 // pred_region
              // Predicated region
              $region64: #{retrieval_head.1} parent=51 // pred_check
                _
              $region65: #{retrieval_head.1} parent=51 // pred_check_branch
                %400 = sbr.rel (0) target = $region67
              $region66: #{retrieval_head.1} parent=51 // pred_region
                loop: start=0, step=1, limit=1
                $region68: #{retrieval_head.1} parent=66 // loop_pre_header
                  _
                $region69: #{retrieval_head.1} parent=66 // loop_header
                  %s402 = sphi 0, %s406
                  %p403 = scmp.ge.s32.totalorder %s402, 1
                  %s407 = sphi %s318, %s318
                  %s408 = sphi %s315, %s315
                $region70: #{retrieval_head.1} parent=66 // loop_header_branch
                  %405 = sbr.rel (%p403) target = $region74
                $region71: #{retrieval_head.1} parent=66 // loop_body
                  %v409 = vld [vmem:[%s407] sm:$0xff]
                  %410 = vst [vmem:[%s408] sm:$0xff] %v409
                  %v411 = vld [vmem:[%s407 + $0x10] sm:$0xff]
                  %412 = vst [vmem:[%s408 + $0x8] sm:$0xff] %v411
                  %v413 = vld [vmem:[%s407 + $0x20] sm:$0xff]
                  %414 = vst [vmem:[%s408 + $0x10] sm:$0xff] %v413
                  %v415 = vld [vmem:[%s407 + $0x30] sm:$0xff]
                  %416 = vst [vmem:[%s408 + $0x18] sm:$0xff] %v415
                  %v417 = vld [vmem:[%s407 + $0x40] sm:$0xff]
                  %418 = vst [vmem:[%s408 + $0x20] sm:$0xff] %v417
                  %v419 = vld [vmem:[%s407 + $0x50] sm:$0xff]
                  %420 = vst [vmem:[%s408 + $0x28] sm:$0xff] %v419
                  %v421 = vld [vmem:[%s407 + $0x60] sm:$0xff]
                  %422 = vst [vmem:[%s408 + $0x30] sm:$0xff] %v421
                  %v423 = vld [vmem:[%s407 + $0x70] sm:$0xff]
                  %424 = vst [vmem:[%s408 + $0x38] sm:$0xff] %v423
                  %v425 = vld [vmem:[%s407 + $0x80] sm:$0xff]
                  %426 = vst [vmem:[%s408 + $0x40] sm:$0xff] %v425
                  %v427 = vld [vmem:[%s407 + $0x90] sm:$0xff]
                  %428 = vst [vmem:[%s408 + $0x48] sm:$0xff] %v427
                  %v429 = vld [vmem:[%s407 + $0xa0] sm:$0xff]
                  %430 = vst [vmem:[%s408 + $0x50] sm:$0xff] %v429
                  %v431 = vld [vmem:[%s407 + $0xb0] sm:$0xff]
                  %432 = vst [vmem:[%s408 + $0x58] sm:$0xff] %v431
                  %v433 = vld [vmem:[%s407 + $0xc0] sm:$0xff]
                  %434 = vst [vmem:[%s408 + $0x60] sm:$0xff] %v433
                  %v435 = vld [vmem:[%s407 + $0xd0] sm:$0xff]
                  %436 = vst [vmem:[%s408 + $0x68] sm:$0xff] %v435
                  %v437 = vld [vmem:[%s407 + $0xe0] sm:$0xff]
                  %438 = vst [vmem:[%s408 + $0x70] sm:$0xff] %v437
                  %v439 = vld [vmem:[%s407 + $0xf0] sm:$0xff]
                  %440 = vst [vmem:[%s408 + $0x78] sm:$0xff] %v439
                  %v441 = vld [vmem:[%s407 + $0x100] sm:$0xff]
                  %442 = vst [vmem:[%s408 + $0x80] sm:$0xff] %v441
                  %v443 = vld [vmem:[%s407 + $0x110] sm:$0xff]
                  %444 = vst [vmem:[%s408 + $0x88] sm:$0xff] %v443
                  %v445 = vld [vmem:[%s407 + $0x120] sm:$0xff]
                  %446 = vst [vmem:[%s408 + $0x90] sm:$0xff] %v445
                  %v447 = vld [vmem:[%s407 + $0x130] sm:$0xff]
                  %448 = vst [vmem:[%s408 + $0x98] sm:$0xff] %v447
                  %v449 = vld [vmem:[%s407 + $0x140] sm:$0xff]
                  %450 = vst [vmem:[%s408 + $0xa0] sm:$0xff] %v449
                  %v451 = vld [vmem:[%s407 + $0x150] sm:$0xff]
                  %452 = vst [vmem:[%s408 + $0xa8] sm:$0xff] %v451
                  %v453 = vld [vmem:[%s407 + $0x160] sm:$0xff]
                  %454 = vst [vmem:[%s408 + $0xb0] sm:$0xff] %v453
                  %v455 = vld [vmem:[%s407 + $0x170] sm:$0xff]
                  %456 = vst [vmem:[%s408 + $0xb8] sm:$0xff] %v455
                  %v457 = vld [vmem:[%s407 + $0x180] sm:$0xff]
                  %458 = vst [vmem:[%s408 + $0xc0] sm:$0xff] %v457
                  %v459 = vld [vmem:[%s407 + $0x190] sm:$0xff]
                  %460 = vst [vmem:[%s408 + $0xc8] sm:$0xff] %v459
                  %v461 = vld [vmem:[%s407 + $0x1a0] sm:$0xff]
                  %462 = vst [vmem:[%s408 + $0xd0] sm:$0xff] %v461
                  %v463 = vld [vmem:[%s407 + $0x1b0] sm:$0xff]
                  %464 = vst [vmem:[%s408 + $0xd8] sm:$0xff] %v463
                  %v465 = vld [vmem:[%s407 + $0x1c0] sm:$0xff]
                  %466 = vst [vmem:[%s408 + $0xe0] sm:$0xff] %v465
                  %v467 = vld [vmem:[%s407 + $0x1d0] sm:$0xff]
                  %468 = vst [vmem:[%s408 + $0xe8] sm:$0xff] %v467
                  %v469 = vld [vmem:[%s407 + $0x1e0] sm:$0xff]
                  %470 = vst [vmem:[%s408 + $0xf0] sm:$0xff] %v469
                  %v471 = vld [vmem:[%s407 + $0x1f0] sm:$0xff]
                  %472 = vst [vmem:[%s408 + $0xf8] sm:$0xff] %v471
                $region72: #{retrieval_head.1} parent=66 // loop_footer
                  %s406 = sadd.s32 1, %s402
                $region73: #{retrieval_head.1} parent=66 // loop_footer_branch
                  %401 = sbr.rel target = $region69
                $region74: #{retrieval_head.1} parent=66 // loop_exit
                  _
              $region67: #{retrieval_head.1} parent=51 // pred_fallthru
                _
              // Predicated region
              $region75: #{retrieval_head.1} parent=51 // pred_check
                _
              $region76: #{retrieval_head.1} parent=51 // pred_check_branch
                %474 = sbr.rel target = $region78
              $region77: #{retrieval_head.1} parent=51 // pred_region
                _
              $region78: #{retrieval_head.1} parent=51 // pred_fallthru
                _
            $region52: #{retrieval_head.1} parent=47 // pred_fallthru
              _
            // Predicated region
            $region53: #{retrieval_head.1} parent=47 // pred_check
              _
            $region54: #{retrieval_head.1} parent=47 // pred_check_branch
              %324 = sbr.rel target = $region56
            $region55: #{retrieval_head.1} parent=47 // pred_region
              %s326 = ssub.s32 256, 1
              loop: start=0, step=1, limit=1
              $region57: #{retrieval_head.1} parent=55 // loop_pre_header
                _
              $region58: #{retrieval_head.1} parent=55 // loop_header
                %s328 = sphi 0, %s332
                %p329 = scmp.ge.s32.totalorder %s328, 1
                %s333 = sphi %s318, %s318
                %s334 = sphi %s315, %s315
              $region59: #{retrieval_head.1} parent=55 // loop_header_branch
                %331 = sbr.rel (%p329) target = $region63
              $region60: #{retrieval_head.1} parent=55 // loop_body
                %v335 = vld [vmem:[%s333] sm:%s326]
                %336 = vst [vmem:[%s334] sm:%s326] %v335
                %v337 = vld [vmem:[%s333 + $0x10] sm:%s326]
                %338 = vst [vmem:[%s334 + $0x8] sm:%s326] %v337
                %v339 = vld [vmem:[%s333 + $0x20] sm:%s326]
                %340 = vst [vmem:[%s334 + $0x10] sm:%s326] %v339
                %v341 = vld [vmem:[%s333 + $0x30] sm:%s326]
                %342 = vst [vmem:[%s334 + $0x18] sm:%s326] %v341
                %v343 = vld [vmem:[%s333 + $0x40] sm:%s326]
                %344 = vst [vmem:[%s334 + $0x20] sm:%s326] %v343
                %v345 = vld [vmem:[%s333 + $0x50] sm:%s326]
                %346 = vst [vmem:[%s334 + $0x28] sm:%s326] %v345
                %v347 = vld [vmem:[%s333 + $0x60] sm:%s326]
                %348 = vst [vmem:[%s334 + $0x30] sm:%s326] %v347
                %v349 = vld [vmem:[%s333 + $0x70] sm:%s326]
                %350 = vst [vmem:[%s334 + $0x38] sm:%s326] %v349
                %v351 = vld [vmem:[%s333 + $0x80] sm:%s326]
                %352 = vst [vmem:[%s334 + $0x40] sm:%s326] %v351
                %v353 = vld [vmem:[%s333 + $0x90] sm:%s326]
                %354 = vst [vmem:[%s334 + $0x48] sm:%s326] %v353
                %v355 = vld [vmem:[%s333 + $0xa0] sm:%s326]
                %356 = vst [vmem:[%s334 + $0x50] sm:%s326] %v355
                %v357 = vld [vmem:[%s333 + $0xb0] sm:%s326]
                %358 = vst [vmem:[%s334 + $0x58] sm:%s326] %v357
                %v359 = vld [vmem:[%s333 + $0xc0] sm:%s326]
                %360 = vst [vmem:[%s334 + $0x60] sm:%s326] %v359
                %v361 = vld [vmem:[%s333 + $0xd0] sm:%s326]
                %362 = vst [vmem:[%s334 + $0x68] sm:%s326] %v361
                %v363 = vld [vmem:[%s333 + $0xe0] sm:%s326]
                %364 = vst [vmem:[%s334 + $0x70] sm:%s326] %v363
                %v365 = vld [vmem:[%s333 + $0xf0] sm:%s326]
                %366 = vst [vmem:[%s334 + $0x78] sm:%s326] %v365
                %v367 = vld [vmem:[%s333 + $0x100] sm:%s326]
                %368 = vst [vmem:[%s334 + $0x80] sm:%s326] %v367
                %v369 = vld [vmem:[%s333 + $0x110] sm:%s326]
                %370 = vst [vmem:[%s334 + $0x88] sm:%s326] %v369
                %v371 = vld [vmem:[%s333 + $0x120] sm:%s326]
                %372 = vst [vmem:[%s334 + $0x90] sm:%s326] %v371
                %v373 = vld [vmem:[%s333 + $0x130] sm:%s326]
                %374 = vst [vmem:[%s334 + $0x98] sm:%s326] %v373
                %v375 = vld [vmem:[%s333 + $0x140] sm:%s326]
                %376 = vst [vmem:[%s334 + $0xa0] sm:%s326] %v375
                %v377 = vld [vmem:[%s333 + $0x150] sm:%s326]
                %378 = vst [vmem:[%s334 + $0xa8] sm:%s326] %v377
                %v379 = vld [vmem:[%s333 + $0x160] sm:%s326]
                %380 = vst [vmem:[%s334 + $0xb0] sm:%s326] %v379
                %v381 = vld [vmem:[%s333 + $0x170] sm:%s326]
                %382 = vst [vmem:[%s334 + $0xb8] sm:%s326] %v381
                %v383 = vld [vmem:[%s333 + $0x180] sm:%s326]
                %384 = vst [vmem:[%s334 + $0xc0] sm:%s326] %v383
                %v385 = vld [vmem:[%s333 + $0x190] sm:%s326]
                %386 = vst [vmem:[%s334 + $0xc8] sm:%s326] %v385
                %v387 = vld [vmem:[%s333 + $0x1a0] sm:%s326]
                %388 = vst [vmem:[%s334 + $0xd0] sm:%s326] %v387
                %v389 = vld [vmem:[%s333 + $0x1b0] sm:%s326]
                %390 = vst [vmem:[%s334 + $0xd8] sm:%s326] %v389
                %v391 = vld [vmem:[%s333 + $0x1c0] sm:%s326]
                %392 = vst [vmem:[%s334 + $0xe0] sm:%s326] %v391
                %v393 = vld [vmem:[%s333 + $0x1d0] sm:%s326]
                %394 = vst [vmem:[%s334 + $0xe8] sm:%s326] %v393
                %v395 = vld [vmem:[%s333 + $0x1e0] sm:%s326]
                %396 = vst [vmem:[%s334 + $0xf0] sm:%s326] %v395
                %v397 = vld [vmem:[%s333 + $0x1f0] sm:%s326]
                %398 = vst [vmem:[%s334 + $0xf8] sm:%s326] %v397
              $region61: #{retrieval_head.1} parent=55 // loop_footer
                %s332 = sadd.s32 1, %s328
              $region62: #{retrieval_head.1} parent=55 // loop_footer_branch
                %327 = sbr.rel target = $region58
              $region63: #{retrieval_head.1} parent=55 // loop_exit
                _
            $region56: #{retrieval_head.1} parent=47 // pred_fallthru
              _
          $region48: #{retrieval_head.1} parent=43 // pred_fallthru
            _
          %475 = vnop
        $region44: #{retrieval_head.1} parent=35 // pred_fallthru
          _
        // Predicated region
        $region79: #{retrieval_head.1} parent=35 // pred_check
          %p476 = pneg %p144
        $region80: #{retrieval_head.1} parent=35 // pred_check_branch
          %478 = sbr.rel (%p476) target = $region82
        $region81: #{retrieval_head.1} parent=35 // pred_region
          %s479 = smul.u32 2, %s26
          %p480 = scmp.lt.s32.totalorder %s479, 3
          %s481 = scalar_select %p480, %s479, 3
          %s482 = scalar_lea.vmem %s4, %s481
          %s483 = smul.u32 2, %s26
        $region82: #{retrieval_head.1} parent=35 // pred_fallthru
          _
        // Predicated region
        $region83: #{retrieval_head.1} parent=35 // pred_check
          %p484 = pneg %p170
        $region84: #{retrieval_head.1} parent=35 // pred_check_branch
          %486 = sbr.rel (%p484) target = $region86
        $region85: #{retrieval_head.1} parent=35 // pred_region
          %s487 = smul.u32 32, %s26
          %p488 = scmp.lt.s32.totalorder %s487, 63
          %s489 = scalar_select %p488, %s487, 63
          %s490 = smul.addr %s489, 2
          %s491 = smul.addr %s490, 4
          %s492 = scalar_lea.vmem %s5, %s491
          %s493 = smul.u32 32, %s26
        $region86: #{retrieval_head.1} parent=35 // pred_fallthru
          _
      $region36: #{retrieval_head.1} parent=5 // pred_fallthru
        _
      %p494 = scmp.le.s32.totalorder 1, %s18
      %p495 = scmp.lt.s32.totalorder %s18, 5
      %p496 = pnand %p494, %p495
      %p497 = pneg %p496
      // Predicated region
      $region87: #{retrieval_head.1} parent=5 // pred_check
        _
      $region88: #{retrieval_head.1} parent=5 // pred_check_branch
        %499 = sbr.rel (%p496) target = $region90
      $region89: #{retrieval_head.1} parent=5 // pred_region
        %s500 = ssub.s32 %s18, 1
        %s501 = sand.u32 %s111, 1
        %s502 = sand.u32 %s111, 1
        %s503 = smul.addr %s502, 256
        %s504 = scalar_lea.vmem [#allocation4], %s503
        // Predicated region
        $region91: #{retrieval_head.1} parent=89 // pred_check
          %p505 = pneg %p124
        $region92: #{retrieval_head.1} parent=89 // pred_check_branch
          %507 = sbr.rel (%p505) target = $region94
        $region93: #{retrieval_head.1} parent=89 // pred_region
          _
        $region94: #{retrieval_head.1} parent=89 // pred_fallthru
          _
        %s508 = smul.u32 16, %s27
        %p509 = scmp.lt.s32.totalorder %s508, 31
        %s510 = scalar_select %p509, %s508, 31
        %s511 = smul.addr %s510, 2
        %s512 = smul.addr %s511, 8
        %s513 = scalar_lea.vmem %s0, %s512
        %p514 = pneg %p56
        %p515 = pneg %p53
        %p516 = pneg %p77
        %p517 = pneg %p74
        %p518 = pneg %p98
        %p519 = pneg %p95
        %s520 = sand.u32 %s111, 1
        %s521 = sand.u32 %s111, 1
        %s522 = smul.addr %s521, 256
        %s523 = scalar_lea.vmem [#allocation4], %s522
        %p524 = pneg %p124
        %p525 = pneg %p121
        %s526 = smul.u32 2, %s28
        %p527 = scmp.lt.s32.totalorder %s526, 3
        %s528 = scalar_select %p527, %s526, 3
        %s529 = scalar_lea.vmem %s4, %s528
        %p530 = pneg %p150
        %p531 = pneg %p147
        %s532 = smul.u32 32, %s28
        %p533 = scmp.lt.s32.totalorder %s532, 63
        %s534 = scalar_select %p533, %s532, 63
        %s535 = smul.addr %s534, 2
        %s536 = smul.addr %s535, 4
        %s537 = scalar_lea.vmem %s5, %s536
        %p538 = pneg %p176
        %p539 = pneg %p173
        %p540 = pneg %p197
        %p541 = pneg %p194
        %p542 = pneg %p218
        %p543 = pneg %p215
        %p544 = pneg %p239
        %p545 = pneg %p236
        %p546 = pneg %p265
        %p547 = pneg %p262
        %s548 = sand.u32 %s252, 1
        %s549 = scalar_lea.sflag [#allocation6], %s548
        %s550 = sand.u32 %s252, 1
        %s551 = smul.addr %s550, 256
        %s552 = scalar_lea.vmem [#allocation5], %s551
        %s553 = smul.u32 16, %s27
        %p554 = scmp.lt.s32.totalorder %s553, 31
        %s555 = scalar_select %p554, %s553, 31
        %s556 = smul.addr %s555, 2
        %s557 = smul.addr %s556, 8
        %s558 = scalar_lea.vmem %s0, %s557
        %s559 = smul.u32 16, %s27
        %s560 = smul.u32 2, %s28
        %s561 = smul.u32 2, %s28
        %p562 = scmp.lt.s32.totalorder %s561, 3
        %s563 = scalar_select %p562, %s561, 3
        %s564 = scalar_lea.vmem %s4, %s563
        %s565 = smul.u32 2, %s28
        %s566 = smul.u32 32, %s28
        %p567 = scmp.lt.s32.totalorder %s566, 63
        %s568 = scalar_select %p567, %s566, 63
        %s569 = smul.addr %s568, 2
        %s570 = smul.addr %s569, 4
        %s571 = scalar_lea.vmem %s5, %s570
        %s572 = smul.u32 32, %s28
        %s573 = smul.u32 16, %s27
        %p574 = scmp.eq.s32.totalorder %s28, 0
        // Predicated region
        $region95: #{retrieval_head.1} parent=89 // pred_check
          %p575 = pneg %p574
        $region96: #{retrieval_head.1} parent=89 // pred_check_branch
          %577 = sbr.rel (%p575) target = $region98
        $region97: #{retrieval_head.1} parent=89 // pred_region
          %v578 = vld [vmem:[%s558] sm:$0xff]
          %v579 = vld [vmem:[%s558 + $0x8] sm:$0xff]
          %v580 = vld [vmem:[%s558 + $0x10] sm:$0xff]
          %v581 = vld [vmem:[%s558 + $0x18] sm:$0xff]
          %v582 = vld [vmem:[%s558 + $0x20] sm:$0xff]
          %v583 = vld [vmem:[%s558 + $0x28] sm:$0xff]
          %v584 = vld [vmem:[%s558 + $0x30] sm:$0xff]
          %v585 = vld [vmem:[%s558 + $0x38] sm:$0xff]
          %v586 = vld [vmem:[%s558 + $0x40] sm:$0xff]
          %v587 = vld [vmem:[%s558 + $0x48] sm:$0xff]
          %v588 = vld [vmem:[%s558 + $0x50] sm:$0xff]
          %v589 = vld [vmem:[%s558 + $0x58] sm:$0xff]
          %v590 = vld [vmem:[%s558 + $0x60] sm:$0xff]
          %v591 = vld [vmem:[%s558 + $0x68] sm:$0xff]
          %v592 = vld [vmem:[%s558 + $0x70] sm:$0xff]
          %v593 = vld [vmem:[%s558 + $0x78] sm:$0xff]
          %v594 = vld [vmem:[%s558 + $0x80] sm:$0xff]
          %v595 = vld [vmem:[%s558 + $0x88] sm:$0xff]
          %v596 = vld [vmem:[%s558 + $0x90] sm:$0xff]
          %v597 = vld [vmem:[%s558 + $0x98] sm:$0xff]
          %v598 = vld [vmem:[%s558 + $0xa0] sm:$0xff]
          %v599 = vld [vmem:[%s558 + $0xa8] sm:$0xff]
          %v600 = vld [vmem:[%s558 + $0xb0] sm:$0xff]
          %v601 = vld [vmem:[%s558 + $0xb8] sm:$0xff]
          %v602 = vld [vmem:[%s558 + $0xc0] sm:$0xff]
          %v603 = vld [vmem:[%s558 + $0xc8] sm:$0xff]
          %v604 = vld [vmem:[%s558 + $0xd0] sm:$0xff]
          %v605 = vld [vmem:[%s558 + $0xd8] sm:$0xff]
          %v606 = vld [vmem:[%s558 + $0xe0] sm:$0xff]
          %v607 = vld [vmem:[%s558 + $0xe8] sm:$0xff]
          %v608 = vld [vmem:[%s558 + $0xf0] sm:$0xff]
          %v609 = vld [vmem:[%s558 + $0xf8] sm:$0xff]
          %v610 = vadd.f32 %v578, %v579
          %611 = vadd.xlane.f32.xlu0 %v610
          %v612 = vpop.xlane.xlu0 %611
          %v613 = vadd.f32 %v580, %v581
          %614 = vadd.xlane.f32.xlu0 %v613
          %v615 = vpop.xlane.xlu0 %614
          %v616 = vadd.f32 %v582, %v583
          %617 = vadd.xlane.f32.xlu0 %v616
          %v618 = vpop.xlane.xlu0 %617
          %v619 = vadd.f32 %v584, %v585
          %620 = vadd.xlane.f32.xlu0 %v619
          %v621 = vpop.xlane.xlu0 %620
          %v622 = vadd.f32 %v586, %v587
          %623 = vadd.xlane.f32.xlu0 %v622
          %v624 = vpop.xlane.xlu0 %623
          %v625 = vadd.f32 %v588, %v589
          %626 = vadd.xlane.f32.xlu0 %v625
          %v627 = vpop.xlane.xlu0 %626
          %v628 = vadd.f32 %v590, %v591
          %629 = vadd.xlane.f32.xlu0 %v628
          %v630 = vpop.xlane.xlu0 %629
          %v631 = vadd.f32 %v592, %v593
          %632 = vadd.xlane.f32.xlu0 %v631
          %v633 = vpop.xlane.xlu0 %632
          %v634 = vadd.f32 %v594, %v595
          %635 = vadd.xlane.f32.xlu0 %v634
          %v636 = vpop.xlane.xlu0 %635
          %v637 = vadd.f32 %v596, %v597
          %638 = vadd.xlane.f32.xlu0 %v637
          %v639 = vpop.xlane.xlu0 %638
          %v640 = vadd.f32 %v598, %v599
          %641 = vadd.xlane.f32.xlu0 %v640
          %v642 = vpop.xlane.xlu0 %641
          %v643 = vadd.f32 %v600, %v601
          %644 = vadd.xlane.f32.xlu0 %v643
          %v645 = vpop.xlane.xlu0 %644
          %v646 = vadd.f32 %v602, %v603
          %647 = vadd.xlane.f32.xlu0 %v646
          %v648 = vpop.xlane.xlu0 %647
          %v649 = vadd.f32 %v604, %v605
          %650 = vadd.xlane.f32.xlu0 %v649
          %v651 = vpop.xlane.xlu0 %650
          %v652 = vadd.f32 %v606, %v607
          %653 = vadd.xlane.f32.xlu0 %v652
          %v654 = vpop.xlane.xlu0 %653
          %v655 = vadd.f32 %v608, %v609
          %656 = vadd.xlane.f32.xlu0 %v655
          %v657 = vpop.xlane.xlu0 %656
          %v658 = vrcp.pop 256.0
          %v659 = vmul.f32 %v612, %v658
          %v660 = vmul.f32 %v615, %v658
          %v661 = vmul.f32 %v618, %v658
          %v662 = vmul.f32 %v621, %v658
          %v663 = vmul.f32 %v624, %v658
          %v664 = vmul.f32 %v627, %v658
          %v665 = vmul.f32 %v630, %v658
          %v666 = vmul.f32 %v633, %v658
          %v667 = vmul.f32 %v636, %v658
          %v668 = vmul.f32 %v639, %v658
          %v669 = vmul.f32 %v642, %v658
          %v670 = vmul.f32 %v645, %v658
          %v671 = vmul.f32 %v648, %v658
          %v672 = vmul.f32 %v651, %v658
          %v673 = vmul.f32 %v654, %v658
          %v674 = vmul.f32 %v657, %v658
          %v675 = vsub.f32 %v578, %v659
          %v676 = vsub.f32 %v579, %v659
          %v677 = vsub.f32 %v580, %v660
          %v678 = vsub.f32 %v581, %v660
          %v679 = vsub.f32 %v582, %v661
          %v680 = vsub.f32 %v583, %v661
          %v681 = vsub.f32 %v584, %v662
          %v682 = vsub.f32 %v585, %v662
          %v683 = vsub.f32 %v586, %v663
          %v684 = vsub.f32 %v587, %v663
          %v685 = vsub.f32 %v588, %v664
          %v686 = vsub.f32 %v589, %v664
          %v687 = vsub.f32 %v590, %v665
          %v688 = vsub.f32 %v591, %v665
          %v689 = vsub.f32 %v592, %v666
          %v690 = vsub.f32 %v593, %v666
          %v691 = vsub.f32 %v594, %v667
          %v692 = vsub.f32 %v595, %v667
          %v693 = vsub.f32 %v596, %v668
          %v694 = vsub.f32 %v597, %v668
          %v695 = vsub.f32 %v598, %v669
          %v696 = vsub.f32 %v599, %v669
          %v697 = vsub.f32 %v600, %v670
          %v698 = vsub.f32 %v601, %v670
          %v699 = vsub.f32 %v602, %v671
          %v700 = vsub.f32 %v603, %v671
          %v701 = vsub.f32 %v604, %v672
          %v702 = vsub.f32 %v605, %v672
          %v703 = vsub.f32 %v606, %v673
          %v704 = vsub.f32 %v607, %v673
          %v705 = vsub.f32 %v608, %v674
          %v706 = vsub.f32 %v609, %v674
          %v707 = vmul.f32 %v675, %v675
          %v708 = vmul.f32 %v676, %v676
          %v709 = vmul.f32 %v677, %v677
          %v710 = vmul.f32 %v678, %v678
          %v711 = vmul.f32 %v679, %v679
          %v712 = vmul.f32 %v680, %v680
          %v713 = vmul.f32 %v681, %v681
          %v714 = vmul.f32 %v682, %v682
          %v715 = vmul.f32 %v683, %v683
          %v716 = vmul.f32 %v684, %v684
          %v717 = vmul.f32 %v685, %v685
          %v718 = vmul.f32 %v686, %v686
          %v719 = vmul.f32 %v687, %v687
          %v720 = vmul.f32 %v688, %v688
          %v721 = vmul.f32 %v689, %v689
          %v722 = vmul.f32 %v690, %v690
          %v723 = vmul.f32 %v691, %v691
          %v724 = vmul.f32 %v692, %v692
          %v725 = vmul.f32 %v693, %v693
          %v726 = vmul.f32 %v694, %v694
          %v727 = vmul.f32 %v695, %v695
          %v728 = vmul.f32 %v696, %v696
          %v729 = vmul.f32 %v697, %v697
          %v730 = vmul.f32 %v698, %v698
          %v731 = vmul.f32 %v699, %v699
          %v732 = vmul.f32 %v700, %v700
          %v733 = vmul.f32 %v701, %v701
          %v734 = vmul.f32 %v702, %v702
          %v735 = vmul.f32 %v703, %v703
          %v736 = vmul.f32 %v704, %v704
          %v737 = vmul.f32 %v705, %v705
          %v738 = vmul.f32 %v706, %v706
          %v739 = vadd.f32 %v707, %v708
          %740 = vadd.xlane.f32.xlu0 %v739
          %v741 = vpop.xlane.xlu0 %740
          %v742 = vadd.f32 %v709, %v710
          %743 = vadd.xlane.f32.xlu0 %v742
          %v744 = vpop.xlane.xlu0 %743
          %v745 = vadd.f32 %v711, %v712
          %746 = vadd.xlane.f32.xlu0 %v745
          %v747 = vpop.xlane.xlu0 %746
          %v748 = vadd.f32 %v713, %v714
          %749 = vadd.xlane.f32.xlu0 %v748
          %v750 = vpop.xlane.xlu0 %749
          %v751 = vadd.f32 %v715, %v716
          %752 = vadd.xlane.f32.xlu0 %v751
          %v753 = vpop.xlane.xlu0 %752
          %v754 = vadd.f32 %v717, %v718
          %755 = vadd.xlane.f32.xlu0 %v754
          %v756 = vpop.xlane.xlu0 %755
          %v757 = vadd.f32 %v719, %v720
          %758 = vadd.xlane.f32.xlu0 %v757
          %v759 = vpop.xlane.xlu0 %758
          %v760 = vadd.f32 %v721, %v722
          %761 = vadd.xlane.f32.xlu0 %v760
          %v762 = vpop.xlane.xlu0 %761
          %v763 = vadd.f32 %v723, %v724
          %764 = vadd.xlane.f32.xlu0 %v763
          %v765 = vpop.xlane.xlu0 %764
          %v766 = vadd.f32 %v725, %v726
          %767 = vadd.xlane.f32.xlu0 %v766
          %v768 = vpop.xlane.xlu0 %767
          %v769 = vadd.f32 %v727, %v728
          %770 = vadd.xlane.f32.xlu0 %v769
          %v771 = vpop.xlane.xlu0 %770
          %v772 = vadd.f32 %v729, %v730
          %773 = vadd.xlane.f32.xlu0 %v772
          %v774 = vpop.xlane.xlu0 %773
          %v775 = vadd.f32 %v731, %v732
          %776 = vadd.xlane.f32.xlu0 %v775
          %v777 = vpop.xlane.xlu0 %776
          %v778 = vadd.f32 %v733, %v734
          %779 = vadd.xlane.f32.xlu0 %v778
          %v780 = vpop.xlane.xlu0 %779
          %v781 = vadd.f32 %v735, %v736
          %782 = vadd.xlane.f32.xlu0 %v781
          %v783 = vpop.xlane.xlu0 %782
          %v784 = vadd.f32 %v737, %v738
          %785 = vadd.xlane.f32.xlu0 %v784
          %v786 = vpop.xlane.xlu0 %785
          %v787 = vmul.f32 %v741, %v658
          %v788 = vmul.f32 %v744, %v658
          %v789 = vmul.f32 %v747, %v658
          %v790 = vmul.f32 %v750, %v658
          %v791 = vmul.f32 %v753, %v658
          %v792 = vmul.f32 %v756, %v658
          %v793 = vmul.f32 %v759, %v658
          %v794 = vmul.f32 %v762, %v658
          %v795 = vmul.f32 %v765, %v658
          %v796 = vmul.f32 %v768, %v658
          %v797 = vmul.f32 %v771, %v658
          %v798 = vmul.f32 %v774, %v658
          %v799 = vmul.f32 %v777, %v658
          %v800 = vmul.f32 %v780, %v658
          %v801 = vmul.f32 %v783, %v658
          %v802 = vmul.f32 %v786, %v658
          %v803 = vadd.f32 %v787, 1e-05
          %v804 = vadd.f32 %v788, 1e-05
          %v805 = vadd.f32 %v789, 1e-05
          %v806 = vadd.f32 %v790, 1e-05
          %v807 = vadd.f32 %v791, 1e-05
          %v808 = vadd.f32 %v792, 1e-05
          %v809 = vadd.f32 %v793, 1e-05
          %v810 = vadd.f32 %v794, 1e-05
          %v811 = vadd.f32 %v795, 1e-05
          %v812 = vadd.f32 %v796, 1e-05
          %v813 = vadd.f32 %v797, 1e-05
          %v814 = vadd.f32 %v798, 1e-05
          %v815 = vadd.f32 %v799, 1e-05
          %v816 = vadd.f32 %v800, 1e-05
          %v817 = vadd.f32 %v801, 1e-05
          %v818 = vadd.f32 %v802, 1e-05
          %v819 = vrsqrt.pop %v803
          %v820 = vrsqrt.pop %v804
          %v821 = vrsqrt.pop %v805
          %v822 = vrsqrt.pop %v806
          %v823 = vrsqrt.pop %v807
          %v824 = vrsqrt.pop %v808
          %v825 = vrsqrt.pop %v809
          %v826 = vrsqrt.pop %v810
          %v827 = vrsqrt.pop %v811
          %v828 = vrsqrt.pop %v812
          %v829 = vrsqrt.pop %v813
          %v830 = vrsqrt.pop %v814
          %v831 = vrsqrt.pop %v815
          %v832 = vrsqrt.pop %v816
          %v833 = vrsqrt.pop %v817
          %v834 = vrsqrt.pop %v818
          %v835 = vmul.f32 %v675, %v819
          %v836 = vmul.f32 %v676, %v819
          %v837 = vmul.f32 %v677, %v820
          %v838 = vmul.f32 %v678, %v820
          %v839 = vmul.f32 %v679, %v821
          %v840 = vmul.f32 %v680, %v821
          %v841 = vmul.f32 %v681, %v822
          %v842 = vmul.f32 %v682, %v822
          %v843 = vmul.f32 %v683, %v823
          %v844 = vmul.f32 %v684, %v823
          %v845 = vmul.f32 %v685, %v824
          %v846 = vmul.f32 %v686, %v824
          %v847 = vmul.f32 %v687, %v825
          %v848 = vmul.f32 %v688, %v825
          %v849 = vmul.f32 %v689, %v826
          %v850 = vmul.f32 %v690, %v826
          %v851 = vmul.f32 %v691, %v827
          %v852 = vmul.f32 %v692, %v827
          %v853 = vmul.f32 %v693, %v828
          %v854 = vmul.f32 %v694, %v828
          %v855 = vmul.f32 %v695, %v829
          %v856 = vmul.f32 %v696, %v829
          %v857 = vmul.f32 %v697, %v830
          %v858 = vmul.f32 %v698, %v830
          %v859 = vmul.f32 %v699, %v831
          %v860 = vmul.f32 %v700, %v831
          %v861 = vmul.f32 %v701, %v832
          %v862 = vmul.f32 %v702, %v832
          %v863 = vmul.f32 %v703, %v833
          %v864 = vmul.f32 %v704, %v833
          %v865 = vmul.f32 %v705, %v834
          %v866 = vmul.f32 %v706, %v834
          %v867 = vld [vmem:[%s1] sm:$0x3]
          %v869 = vlaneseq
          %v870 = vshrl.u32 %v869, 7
          %v871 = vsub.s32 0, %v870
          %v872 = vrot.slane %v867, %v871
          %v873 = vlaneseq
          %v874 = vshrl.u32 %v873, 7
          %v875 = vsub.s32 1, %v874
          %v876 = vrot.slane %v867, %v875
          %v879 = vmul.f32 %v835, %v872
          %v880 = vmul.f32 %v836, %v876
          %v881 = vmul.f32 %v837, %v872
          %v882 = vmul.f32 %v838, %v876
          %v883 = vmul.f32 %v839, %v872
          %v884 = vmul.f32 %v840, %v876
          %v885 = vmul.f32 %v841, %v872
          %v886 = vmul.f32 %v842, %v876
          %v887 = vmul.f32 %v843, %v872
          %v888 = vmul.f32 %v844, %v876
          %v889 = vmul.f32 %v845, %v872
          %v890 = vmul.f32 %v846, %v876
          %v891 = vmul.f32 %v847, %v872
          %v892 = vmul.f32 %v848, %v876
          %v893 = vmul.f32 %v849, %v872
          %v894 = vmul.f32 %v850, %v876
          %v895 = vmul.f32 %v851, %v872
          %v896 = vmul.f32 %v852, %v876
          %v897 = vmul.f32 %v853, %v872
          %v898 = vmul.f32 %v854, %v876
          %v899 = vmul.f32 %v855, %v872
          %v900 = vmul.f32 %v856, %v876
          %v901 = vmul.f32 %v857, %v872
          %v902 = vmul.f32 %v858, %v876
          %v903 = vmul.f32 %v859, %v872
          %v904 = vmul.f32 %v860, %v876
          %v905 = vmul.f32 %v861, %v872
          %v906 = vmul.f32 %v862, %v876
          %v907 = vmul.f32 %v863, %v872
          %v908 = vmul.f32 %v864, %v876
          %v909 = vmul.f32 %v865, %v872
          %v910 = vmul.f32 %v866, %v876
          %v911 = vld [vmem:[%s2] sm:$0x3]
          %v913 = vlaneseq
          %v914 = vshrl.u32 %v913, 7
          %v915 = vsub.s32 0, %v914
          %v916 = vrot.slane %v911, %v915
          %v917 = vlaneseq
          %v918 = vshrl.u32 %v917, 7
          %v919 = vsub.s32 1, %v918
          %v920 = vrot.slane %v911, %v919
          %v923 = vadd.f32 %v879, %v916
          %v924 = vadd.f32 %v880, %v920
          %v925 = vadd.f32 %v881, %v916
          %v926 = vadd.f32 %v882, %v920
          %v927 = vadd.f32 %v883, %v916
          %v928 = vadd.f32 %v884, %v920
          %v929 = vadd.f32 %v885, %v916
          %v930 = vadd.f32 %v886, %v920
          %v931 = vadd.f32 %v887, %v916
          %v932 = vadd.f32 %v888, %v920
          %v933 = vadd.f32 %v889, %v916
          %v934 = vadd.f32 %v890, %v920
          %v935 = vadd.f32 %v891, %v916
          %v936 = vadd.f32 %v892, %v920
          %v937 = vadd.f32 %v893, %v916
          %v938 = vadd.f32 %v894, %v920
          %v939 = vadd.f32 %v895, %v916
          %v940 = vadd.f32 %v896, %v920
          %v941 = vadd.f32 %v897, %v916
          %v942 = vadd.f32 %v898, %v920
          %v943 = vadd.f32 %v899, %v916
          %v944 = vadd.f32 %v900, %v920
          %v945 = vadd.f32 %v901, %v916
          %v946 = vadd.f32 %v902, %v920
          %v947 = vadd.f32 %v903, %v916
          %v948 = vadd.f32 %v904, %v920
          %v949 = vadd.f32 %v905, %v916
          %v950 = vadd.f32 %v906, %v920
          %v951 = vadd.f32 %v907, %v916
          %v952 = vadd.f32 %v908, %v920
          %v953 = vadd.f32 %v909, %v916
          %v954 = vadd.f32 %v910, %v920
          %955 = vst [vmem:[#allocation2] sm:$0xff] %v923
          %956 = vst [vmem:[#allocation2 + $0x8] sm:$0xff] %v924
          %957 = vst [vmem:[#allocation2 + $0x10] sm:$0xff] %v925
          %958 = vst [vmem:[#allocation2 + $0x18] sm:$0xff] %v926
          %959 = vst [vmem:[#allocation2 + $0x20] sm:$0xff] %v927
          %960 = vst [vmem:[#allocation2 + $0x28] sm:$0xff] %v928
          %961 = vst [vmem:[#allocation2 + $0x30] sm:$0xff] %v929
          %962 = vst [vmem:[#allocation2 + $0x38] sm:$0xff] %v930
          %963 = vst [vmem:[#allocation2 + $0x40] sm:$0xff] %v931
          %964 = vst [vmem:[#allocation2 + $0x48] sm:$0xff] %v932
          %965 = vst [vmem:[#allocation2 + $0x50] sm:$0xff] %v933
          %966 = vst [vmem:[#allocation2 + $0x58] sm:$0xff] %v934
          %967 = vst [vmem:[#allocation2 + $0x60] sm:$0xff] %v935
          %968 = vst [vmem:[#allocation2 + $0x68] sm:$0xff] %v936
          %969 = vst [vmem:[#allocation2 + $0x70] sm:$0xff] %v937
          %970 = vst [vmem:[#allocation2 + $0x78] sm:$0xff] %v938
          %971 = vst [vmem:[#allocation2 + $0x80] sm:$0xff] %v939
          %972 = vst [vmem:[#allocation2 + $0x88] sm:$0xff] %v940
          %973 = vst [vmem:[#allocation2 + $0x90] sm:$0xff] %v941
          %974 = vst [vmem:[#allocation2 + $0x98] sm:$0xff] %v942
          %975 = vst [vmem:[#allocation2 + $0xa0] sm:$0xff] %v943
          %976 = vst [vmem:[#allocation2 + $0xa8] sm:$0xff] %v944
          %977 = vst [vmem:[#allocation2 + $0xb0] sm:$0xff] %v945
          %978 = vst [vmem:[#allocation2 + $0xb8] sm:$0xff] %v946
          %979 = vst [vmem:[#allocation2 + $0xc0] sm:$0xff] %v947
          %980 = vst [vmem:[#allocation2 + $0xc8] sm:$0xff] %v948
          %981 = vst [vmem:[#allocation2 + $0xd0] sm:$0xff] %v949
          %982 = vst [vmem:[#allocation2 + $0xd8] sm:$0xff] %v950
          %983 = vst [vmem:[#allocation2 + $0xe0] sm:$0xff] %v951
          %984 = vst [vmem:[#allocation2 + $0xe8] sm:$0xff] %v952
          %985 = vst [vmem:[#allocation2 + $0xf0] sm:$0xff] %v953
          %986 = vst [vmem:[#allocation2 + $0xf8] sm:$0xff] %v954
          %987 = vst [vmem:[#allocation3] sm:$0xff] 0.0
          %988 = vst [vmem:[#allocation3 + $0x8] sm:$0xff] 0.0
          %989 = vst [vmem:[#allocation3 + $0x10] sm:$0xff] 0.0
          %990 = vst [vmem:[#allocation3 + $0x18] sm:$0xff] 0.0
          %991 = vst [vmem:[#allocation3 + $0x20] sm:$0xff] 0.0
          %992 = vst [vmem:[#allocation3 + $0x28] sm:$0xff] 0.0
          %993 = vst [vmem:[#allocation3 + $0x30] sm:$0xff] 0.0
          %994 = vst [vmem:[#allocation3 + $0x38] sm:$0xff] 0.0
          %995 = vst [vmem:[#allocation3 + $0x40] sm:$0xff] 0.0
          %996 = vst [vmem:[#allocation3 + $0x48] sm:$0xff] 0.0
          %997 = vst [vmem:[#allocation3 + $0x50] sm:$0xff] 0.0
          %998 = vst [vmem:[#allocation3 + $0x58] sm:$0xff] 0.0
          %999 = vst [vmem:[#allocation3 + $0x60] sm:$0xff] 0.0
          %1000 = vst [vmem:[#allocation3 + $0x68] sm:$0xff] 0.0
          %1001 = vst [vmem:[#allocation3 + $0x70] sm:$0xff] 0.0
          %1002 = vst [vmem:[#allocation3 + $0x78] sm:$0xff] 0.0
          %1003 = vst [vmem:[#allocation3 + $0x80] sm:$0xff] 0.0
          %1004 = vst [vmem:[#allocation3 + $0x88] sm:$0xff] 0.0
          %1005 = vst [vmem:[#allocation3 + $0x90] sm:$0xff] 0.0
          %1006 = vst [vmem:[#allocation3 + $0x98] sm:$0xff] 0.0
          %1007 = vst [vmem:[#allocation3 + $0xa0] sm:$0xff] 0.0
          %1008 = vst [vmem:[#allocation3 + $0xa8] sm:$0xff] 0.0
          %1009 = vst [vmem:[#allocation3 + $0xb0] sm:$0xff] 0.0
          %1010 = vst [vmem:[#allocation3 + $0xb8] sm:$0xff] 0.0
          %1011 = vst [vmem:[#allocation3 + $0xc0] sm:$0xff] 0.0
          %1012 = vst [vmem:[#allocation3 + $0xc8] sm:$0xff] 0.0
          %1013 = vst [vmem:[#allocation3 + $0xd0] sm:$0xff] 0.0
          %1014 = vst [vmem:[#allocation3 + $0xd8] sm:$0xff] 0.0
          %1015 = vst [vmem:[#allocation3 + $0xe0] sm:$0xff] 0.0
          %1016 = vst [vmem:[#allocation3 + $0xe8] sm:$0xff] 0.0
          %1017 = vst [vmem:[#allocation3 + $0xf0] sm:$0xff] 0.0
          %1018 = vst [vmem:[#allocation3 + $0xf8] sm:$0xff] 0.0
        $region98: #{retrieval_head.1} parent=89 // pred_fallthru
          _
        %v1019 = vld [vmem:[#allocation2] sm:$0xff]
        %v1020 = vld [vmem:[#allocation2 + $0x8] sm:$0xff]
        %v1021 = vld [vmem:[#allocation2 + $0x10] sm:$0xff]
        %v1022 = vld [vmem:[#allocation2 + $0x18] sm:$0xff]
        %v1023 = vld [vmem:[#allocation2 + $0x20] sm:$0xff]
        %v1024 = vld [vmem:[#allocation2 + $0x28] sm:$0xff]
        %v1025 = vld [vmem:[#allocation2 + $0x30] sm:$0xff]
        %v1026 = vld [vmem:[#allocation2 + $0x38] sm:$0xff]
        %v1027 = vld [vmem:[#allocation2 + $0x40] sm:$0xff]
        %v1028 = vld [vmem:[#allocation2 + $0x48] sm:$0xff]
        %v1029 = vld [vmem:[#allocation2 + $0x50] sm:$0xff]
        %v1030 = vld [vmem:[#allocation2 + $0x58] sm:$0xff]
        %v1031 = vld [vmem:[#allocation2 + $0x60] sm:$0xff]
        %v1032 = vld [vmem:[#allocation2 + $0x68] sm:$0xff]
        %v1033 = vld [vmem:[#allocation2 + $0x70] sm:$0xff]
        %v1034 = vld [vmem:[#allocation2 + $0x78] sm:$0xff]
        %v1035 = vld [vmem:[#allocation2 + $0x80] sm:$0xff]
        %v1036 = vld [vmem:[#allocation2 + $0x88] sm:$0xff]
        %v1037 = vld [vmem:[#allocation2 + $0x90] sm:$0xff]
        %v1038 = vld [vmem:[#allocation2 + $0x98] sm:$0xff]
        %v1039 = vld [vmem:[#allocation2 + $0xa0] sm:$0xff]
        %v1040 = vld [vmem:[#allocation2 + $0xa8] sm:$0xff]
        %v1041 = vld [vmem:[#allocation2 + $0xb0] sm:$0xff]
        %v1042 = vld [vmem:[#allocation2 + $0xb8] sm:$0xff]
        %v1043 = vld [vmem:[#allocation2 + $0xc0] sm:$0xff]
        %v1044 = vld [vmem:[#allocation2 + $0xc8] sm:$0xff]
        %v1045 = vld [vmem:[#allocation2 + $0xd0] sm:$0xff]
        %v1046 = vld [vmem:[#allocation2 + $0xd8] sm:$0xff]
        %v1047 = vld [vmem:[#allocation2 + $0xe0] sm:$0xff]
        %v1048 = vld [vmem:[#allocation2 + $0xe8] sm:$0xff]
        %v1049 = vld [vmem:[#allocation2 + $0xf0] sm:$0xff]
        %v1050 = vld [vmem:[#allocation2 + $0xf8] sm:$0xff]
        %v1051 = vpack.c.bf16 %v1021, %v1019
        %v1052 = vpack.c.bf16 %v1022, %v1020
        %v1053 = vpack.c.bf16 %v1025, %v1023
        %v1054 = vpack.c.bf16 %v1026, %v1024
        %v1055 = vpack.c.bf16 %v1029, %v1027
        %v1056 = vpack.c.bf16 %v1030, %v1028
        %v1057 = vpack.c.bf16 %v1033, %v1031
        %v1058 = vpack.c.bf16 %v1034, %v1032
        %v1059 = vpack.c.bf16 %v1037, %v1035
        %v1060 = vpack.c.bf16 %v1038, %v1036
        %v1061 = vpack.c.bf16 %v1041, %v1039
        %v1062 = vpack.c.bf16 %v1042, %v1040
        %v1063 = vpack.c.bf16 %v1045, %v1043
        %v1064 = vpack.c.bf16 %v1046, %v1044
        %v1065 = vpack.c.bf16 %v1049, %v1047
        %v1066 = vpack.c.bf16 %v1050, %v1048
        %v1067 = vld [vmem:[%s504] sm:$0xff]
        %v1068 = vld [vmem:[%s504 + $0x8] sm:$0xff]
        %v1069 = vld [vmem:[%s504 + $0x10] sm:$0xff]
        %v1070 = vld [vmem:[%s504 + $0x18] sm:$0xff]
        %v1071 = vld [vmem:[%s504 + $0x20] sm:$0xff]
        %v1072 = vld [vmem:[%s504 + $0x28] sm:$0xff]
        %v1073 = vld [vmem:[%s504 + $0x30] sm:$0xff]
        %v1074 = vld [vmem:[%s504 + $0x38] sm:$0xff]
        %v1075 = vld [vmem:[%s504 + $0x40] sm:$0xff]
        %v1076 = vld [vmem:[%s504 + $0x48] sm:$0xff]
        %v1077 = vld [vmem:[%s504 + $0x50] sm:$0xff]
        %v1078 = vld [vmem:[%s504 + $0x58] sm:$0xff]
        %v1079 = vld [vmem:[%s504 + $0x60] sm:$0xff]
        %v1080 = vld [vmem:[%s504 + $0x68] sm:$0xff]
        %v1081 = vld [vmem:[%s504 + $0x70] sm:$0xff]
        %v1082 = vld [vmem:[%s504 + $0x78] sm:$0xff]
        %v1083 = vld [vmem:[%s504 + $0x80] sm:$0xff]
        %v1084 = vld [vmem:[%s504 + $0x88] sm:$0xff]
        %v1085 = vld [vmem:[%s504 + $0x90] sm:$0xff]
        %v1086 = vld [vmem:[%s504 + $0x98] sm:$0xff]
        %v1087 = vld [vmem:[%s504 + $0xa0] sm:$0xff]
        %v1088 = vld [vmem:[%s504 + $0xa8] sm:$0xff]
        %v1089 = vld [vmem:[%s504 + $0xb0] sm:$0xff]
        %v1090 = vld [vmem:[%s504 + $0xb8] sm:$0xff]
        %v1091 = vld [vmem:[%s504 + $0xc0] sm:$0xff]
        %v1092 = vld [vmem:[%s504 + $0xc8] sm:$0xff]
        %v1093 = vld [vmem:[%s504 + $0xd0] sm:$0xff]
        %v1094 = vld [vmem:[%s504 + $0xd8] sm:$0xff]
        %v1095 = vld [vmem:[%s504 + $0xe0] sm:$0xff]
        %v1096 = vld [vmem:[%s504 + $0xe8] sm:$0xff]
        %v1097 = vld [vmem:[%s504 + $0xf0] sm:$0xff]
        %v1098 = vld [vmem:[%s504 + $0xf8] sm:$0xff]
        %v1099 = vld [vmem:[%s564] sm:$0x3]
        %v1101 = vlaneseq
        %v1102 = vshrl.u32 %v1101, 7
        %v1103 = vsub.s32 0, %v1102
        %v1104 = vrot.slane %v1099, %v1103
        %v1105 = vlaneseq
        %v1106 = vshrl.u32 %v1105, 7
        %v1107 = vsub.s32 1, %v1106
        %v1108 = vrot.slane %v1099, %v1107
        %v1143 = vunpack.c.l.b16 %v1067
        %v1144 = vunpack.c.h.b16 %v1067
        %v1145 = vunpack.c.l.b16 %v1068
        %v1146 = vunpack.c.h.b16 %v1068
        %v1147 = vunpack.c.l.b16 %v1069
        %v1148 = vunpack.c.h.b16 %v1069
        %v1149 = vunpack.c.l.b16 %v1070
        %v1150 = vunpack.c.h.b16 %v1070
        %v1151 = vunpack.c.l.b16 %v1071
        %v1152 = vunpack.c.h.b16 %v1071
        %v1153 = vunpack.c.l.b16 %v1072
        %v1154 = vunpack.c.h.b16 %v1072
        %v1155 = vunpack.c.l.b16 %v1073
        %v1156 = vunpack.c.h.b16 %v1073
        %v1157 = vunpack.c.l.b16 %v1074
        %v1158 = vunpack.c.h.b16 %v1074
        %v1159 = vunpack.c.l.b16 %v1075
        %v1160 = vunpack.c.h.b16 %v1075
        %v1161 = vunpack.c.l.b16 %v1076
        %v1162 = vunpack.c.h.b16 %v1076
        %v1163 = vunpack.c.l.b16 %v1077
        %v1164 = vunpack.c.h.b16 %v1077
        %v1165 = vunpack.c.l.b16 %v1078
        %v1166 = vunpack.c.h.b16 %v1078
        %v1167 = vunpack.c.l.b16 %v1079
        %v1168 = vunpack.c.h.b16 %v1079
        %v1169 = vunpack.c.l.b16 %v1080
        %v1170 = vunpack.c.h.b16 %v1080
        %v1171 = vunpack.c.l.b16 %v1081
        %v1172 = vunpack.c.h.b16 %v1081
        %v1173 = vunpack.c.l.b16 %v1082
        %v1174 = vunpack.c.h.b16 %v1082
        %v1175 = vunpack.c.l.b16 %v1083
        %v1176 = vunpack.c.h.b16 %v1083
        %v1177 = vunpack.c.l.b16 %v1084
        %v1178 = vunpack.c.h.b16 %v1084
        %v1179 = vunpack.c.l.b16 %v1085
        %v1180 = vunpack.c.h.b16 %v1085
        %v1181 = vunpack.c.l.b16 %v1086
        %v1182 = vunpack.c.h.b16 %v1086
        %v1183 = vunpack.c.l.b16 %v1087
        %v1184 = vunpack.c.h.b16 %v1087
        %v1185 = vunpack.c.l.b16 %v1088
        %v1186 = vunpack.c.h.b16 %v1088
        %v1187 = vunpack.c.l.b16 %v1089
        %v1188 = vunpack.c.h.b16 %v1089
        %v1189 = vunpack.c.l.b16 %v1090
        %v1190 = vunpack.c.h.b16 %v1090
        %v1191 = vunpack.c.l.b16 %v1091
        %v1192 = vunpack.c.h.b16 %v1091
        %v1193 = vunpack.c.l.b16 %v1092
        %v1194 = vunpack.c.h.b16 %v1092
        %v1195 = vunpack.c.l.b16 %v1093
        %v1196 = vunpack.c.h.b16 %v1093
        %v1197 = vunpack.c.l.b16 %v1094
        %v1198 = vunpack.c.h.b16 %v1094
        %v1199 = vunpack.c.l.b16 %v1095
        %v1200 = vunpack.c.h.b16 %v1095
        %v1201 = vunpack.c.l.b16 %v1096
        %v1202 = vunpack.c.h.b16 %v1096
        %v1203 = vunpack.c.l.b16 %v1097
        %v1204 = vunpack.c.h.b16 %v1097
        %v1205 = vunpack.c.l.b16 %v1098
        %v1206 = vunpack.c.h.b16 %v1098
        %v1207 = vpack.c.b16 %v1145, %v1143
        %v1208 = vpack.c.b16 %v1146, %v1144
        %v1209 = vpack.c.b16 %v1149, %v1147
        %v1210 = vpack.c.b16 %v1150, %v1148
        %v1211 = vpack.c.b16 %v1153, %v1151
        %v1212 = vpack.c.b16 %v1154, %v1152
        %v1213 = vpack.c.b16 %v1157, %v1155
        %v1214 = vpack.c.b16 %v1158, %v1156
        %v1215 = vpack.c.b16 %v1161, %v1159
        %v1216 = vpack.c.b16 %v1162, %v1160
        %v1217 = vpack.c.b16 %v1165, %v1163
        %v1218 = vpack.c.b16 %v1166, %v1164
        %v1219 = vpack.c.b16 %v1169, %v1167
        %v1220 = vpack.c.b16 %v1170, %v1168
        %v1221 = vpack.c.b16 %v1173, %v1171
        %v1222 = vpack.c.b16 %v1174, %v1172
        %v1223 = vpack.c.b16 %v1177, %v1175
        %v1224 = vpack.c.b16 %v1178, %v1176
        %v1225 = vpack.c.b16 %v1181, %v1179
        %v1226 = vpack.c.b16 %v1182, %v1180
        %v1227 = vpack.c.b16 %v1185, %v1183
        %v1228 = vpack.c.b16 %v1186, %v1184
        %v1229 = vpack.c.b16 %v1189, %v1187
        %v1230 = vpack.c.b16 %v1190, %v1188
        %v1231 = vpack.c.b16 %v1193, %v1191
        %v1232 = vpack.c.b16 %v1194, %v1192
        %v1233 = vpack.c.b16 %v1197, %v1195
        %v1234 = vpack.c.b16 %v1198, %v1196
        %v1235 = vpack.c.b16 %v1201, %v1199
        %v1236 = vpack.c.b16 %v1202, %v1200
        %v1237 = vpack.c.b16 %v1205, %v1203
        %v1238 = vpack.c.b16 %v1206, %v1204
        %1271 = vmatprep.subr.bf16.mxu0 %v1222
        %1272 = vmatpush1.bf16.msra.mxu0 %v1221
        %1273 = vmatprep.subr.bf16.mxu0 %v1220
        %1274 = vmatpush1.bf16.msra.mxu0 %v1219
        %1275 = vmatprep.subr.bf16.mxu0 %v1218
        %1276 = vmatpush1.bf16.msra.mxu0 %v1217
        %1277 = vmatprep.subr.bf16.mxu0 %v1216
        %1278 = vmatpush1.bf16.msra.mxu0 %v1215
        %1279 = vmatprep.subr.bf16.mxu0 %v1214
        %1280 = vmatpush1.bf16.msra.mxu0 %v1213
        %1281 = vmatprep.subr.bf16.mxu0 %v1212
        %1282 = vmatpush1.bf16.msra.mxu0 %v1211
        %1283 = vmatprep.subr.bf16.mxu0 %v1210
        %1284 = vmatpush1.bf16.msra.mxu0 %v1209
        %1285 = vmatprep.subr.bf16.mxu0 %v1208
        %1286 = vmatpush1.bf16.msra.mxu0 %v1207
        %1287 = vmatprep.subr.bf16.mxu0 %v1238
        %1288 = vmatpush2.bf16.msra.mxu0 %v1237
        %1289 = vmatprep.subr.bf16.mxu0 %v1236
        %1290 = vmatpush2.bf16.msra.mxu0 %v1235
        %1291 = vmatprep.subr.bf16.mxu0 %v1234
        %1292 = vmatpush2.bf16.msra.mxu0 %v1233
        %1293 = vmatprep.subr.bf16.mxu0 %v1232
        %1294 = vmatpush2.bf16.msra.mxu0 %v1231
        %1295 = vmatprep.subr.bf16.mxu0 %v1230
        %1296 = vmatpush2.bf16.msra.mxu0 %v1229
        %1297 = vmatprep.subr.bf16.mxu0 %v1228
        %1298 = vmatpush2.bf16.msra.mxu0 %v1227
        %1299 = vmatprep.subr.bf16.mxu0 %v1226
        %1300 = vmatpush2.bf16.msra.mxu0 %v1225
        %1301 = vmatprep.subr.bf16.mxu0 %v1224
        %1302 = vmatpush2.bf16.msra.mxu0 %v1223
        %1303 = vmatprep.mubr.bf16.mxu0 %v1052
        %1304 = vmatmul.mubr.bf16.gmra.mxu0 %v1051
        %v1305 = vpop.f32.mrf.mxu0
        %v1306 = vadd.f32 %v1104, %v1305
        %v1307 = vpop.f32.mrf.mxu0
        %v1308 = vadd.f32 %v1108, %v1307
        %v1309 = vpop.f32.mrf.mxu0
        %v1310 = vadd.f32 %v1104, %v1309
        %v1311 = vpop.f32.mrf.mxu0
        %v1312 = vadd.f32 %v1108, %v1311
        %1313 = vmatprep.mubr.bf16.mxu0 %v1054
        %1314 = vmatmul.mubr.bf16.gmra.mxu0 %v1053
        %v1315 = vpop.f32.mrf.mxu0
        %v1316 = vadd.f32 %v1104, %v1315
        %v1317 = vpop.f32.mrf.mxu0
        %v1318 = vadd.f32 %v1108, %v1317
        %v1319 = vpop.f32.mrf.mxu0
        %v1320 = vadd.f32 %v1104, %v1319
        %v1321 = vpop.f32.mrf.mxu0
        %v1322 = vadd.f32 %v1108, %v1321
        %1323 = vmatprep.mubr.bf16.mxu0 %v1056
        %1324 = vmatmul.mubr.bf16.gmra.mxu0 %v1055
        %v1325 = vpop.f32.mrf.mxu0
        %v1326 = vadd.f32 %v1104, %v1325
        %v1327 = vpop.f32.mrf.mxu0
        %v1328 = vadd.f32 %v1108, %v1327
        %v1329 = vpop.f32.mrf.mxu0
        %v1330 = vadd.f32 %v1104, %v1329
        %v1331 = vpop.f32.mrf.mxu0
        %v1332 = vadd.f32 %v1108, %v1331
        %1333 = vmatprep.mubr.bf16.mxu0 %v1058
        %1334 = vmatmul.mubr.bf16.gmra.mxu0 %v1057
        %v1335 = vpop.f32.mrf.mxu0
        %v1336 = vadd.f32 %v1104, %v1335
        %v1337 = vpop.f32.mrf.mxu0
        %v1338 = vadd.f32 %v1108, %v1337
        %v1339 = vpop.f32.mrf.mxu0
        %v1340 = vadd.f32 %v1104, %v1339
        %v1341 = vpop.f32.mrf.mxu0
        %v1342 = vadd.f32 %v1108, %v1341
        %1343 = vmatprep.mubr.bf16.mxu0 %v1060
        %1344 = vmatmul.mubr.bf16.gmra.mxu0 %v1059
        %v1345 = vpop.f32.mrf.mxu0
        %v1346 = vadd.f32 %v1104, %v1345
        %v1347 = vpop.f32.mrf.mxu0
        %v1348 = vadd.f32 %v1108, %v1347
        %v1349 = vpop.f32.mrf.mxu0
        %v1350 = vadd.f32 %v1104, %v1349
        %v1351 = vpop.f32.mrf.mxu0
        %v1352 = vadd.f32 %v1108, %v1351
        %1353 = vmatprep.mubr.bf16.mxu0 %v1062
        %1354 = vmatmul.mubr.bf16.gmra.mxu0 %v1061
        %v1355 = vpop.f32.mrf.mxu0
        %v1356 = vadd.f32 %v1104, %v1355
        %v1357 = vpop.f32.mrf.mxu0
        %v1358 = vadd.f32 %v1108, %v1357
        %v1359 = vpop.f32.mrf.mxu0
        %v1360 = vadd.f32 %v1104, %v1359
        %v1361 = vpop.f32.mrf.mxu0
        %v1362 = vadd.f32 %v1108, %v1361
        %1363 = vmatprep.mubr.bf16.mxu0 %v1064
        %1364 = vmatmul.mubr.bf16.gmra.mxu0 %v1063
        %v1365 = vpop.f32.mrf.mxu0
        %v1366 = vadd.f32 %v1104, %v1365
        %v1367 = vpop.f32.mrf.mxu0
        %v1368 = vadd.f32 %v1108, %v1367
        %v1369 = vpop.f32.mrf.mxu0
        %v1370 = vadd.f32 %v1104, %v1369
        %v1371 = vpop.f32.mrf.mxu0
        %v1372 = vadd.f32 %v1108, %v1371
        %1373 = vmatprep.mubr.bf16.mxu0 %v1066
        %1374 = vmatmul.mubr.bf16.gmra.mxu0 %v1065
        %v1375 = vpop.f32.mrf.mxu0
        %v1376 = vadd.f32 %v1104, %v1375
        %v1377 = vpop.f32.mrf.mxu0
        %v1378 = vadd.f32 %v1108, %v1377
        %v1379 = vpop.f32.mrf.mxu0
        %v1380 = vadd.f32 %v1104, %v1379
        %v1381 = vpop.f32.mrf.mxu0
        %v1382 = vadd.f32 %v1108, %v1381
        %1383 = vdwg.mxu0
        %v1384 = vmax.f32 %v1306, 0.0
        %v1385 = vmax.f32 %v1308, 0.0
        %v1386 = vmax.f32 %v1310, 0.0
        %v1387 = vmax.f32 %v1312, 0.0
        %v1388 = vmax.f32 %v1316, 0.0
        %v1389 = vmax.f32 %v1318, 0.0
        %v1390 = vmax.f32 %v1320, 0.0
        %v1391 = vmax.f32 %v1322, 0.0
        %v1392 = vmax.f32 %v1326, 0.0
        %v1393 = vmax.f32 %v1328, 0.0
        %v1394 = vmax.f32 %v1330, 0.0
        %v1395 = vmax.f32 %v1332, 0.0
        %v1396 = vmax.f32 %v1336, 0.0
        %v1397 = vmax.f32 %v1338, 0.0
        %v1398 = vmax.f32 %v1340, 0.0
        %v1399 = vmax.f32 %v1342, 0.0
        %v1400 = vmax.f32 %v1346, 0.0
        %v1401 = vmax.f32 %v1348, 0.0
        %v1402 = vmax.f32 %v1350, 0.0
        %v1403 = vmax.f32 %v1352, 0.0
        %v1404 = vmax.f32 %v1356, 0.0
        %v1405 = vmax.f32 %v1358, 0.0
        %v1406 = vmax.f32 %v1360, 0.0
        %v1407 = vmax.f32 %v1362, 0.0
        %v1408 = vmax.f32 %v1366, 0.0
        %v1409 = vmax.f32 %v1368, 0.0
        %v1410 = vmax.f32 %v1370, 0.0
        %v1411 = vmax.f32 %v1372, 0.0
        %v1412 = vmax.f32 %v1376, 0.0
        %v1413 = vmax.f32 %v1378, 0.0
        %v1414 = vmax.f32 %v1380, 0.0
        %v1415 = vmax.f32 %v1382, 0.0
        %v1416 = vld [vmem:[#allocation3] sm:$0xff]
        %v1417 = vld [vmem:[#allocation3 + $0x8] sm:$0xff]
        %v1418 = vld [vmem:[#allocation3 + $0x10] sm:$0xff]
        %v1419 = vld [vmem:[#allocation3 + $0x18] sm:$0xff]
        %v1420 = vld [vmem:[#allocation3 + $0x20] sm:$0xff]
        %v1421 = vld [vmem:[#allocation3 + $0x28] sm:$0xff]
        %v1422 = vld [vmem:[#allocation3 + $0x30] sm:$0xff]
        %v1423 = vld [vmem:[#allocation3 + $0x38] sm:$0xff]
        %v1424 = vld [vmem:[#allocation3 + $0x40] sm:$0xff]
        %v1425 = vld [vmem:[#allocation3 + $0x48] sm:$0xff]
        %v1426 = vld [vmem:[#allocation3 + $0x50] sm:$0xff]
        %v1427 = vld [vmem:[#allocation3 + $0x58] sm:$0xff]
        %v1428 = vld [vmem:[#allocation3 + $0x60] sm:$0xff]
        %v1429 = vld [vmem:[#allocation3 + $0x68] sm:$0xff]
        %v1430 = vld [vmem:[#allocation3 + $0x70] sm:$0xff]
        %v1431 = vld [vmem:[#allocation3 + $0x78] sm:$0xff]
        %v1432 = vld [vmem:[#allocation3 + $0x80] sm:$0xff]
        %v1433 = vld [vmem:[#allocation3 + $0x88] sm:$0xff]
        %v1434 = vld [vmem:[#allocation3 + $0x90] sm:$0xff]
        %v1435 = vld [vmem:[#allocation3 + $0x98] sm:$0xff]
        %v1436 = vld [vmem:[#allocation3 + $0xa0] sm:$0xff]
        %v1437 = vld [vmem:[#allocation3 + $0xa8] sm:$0xff]
        %v1438 = vld [vmem:[#allocation3 + $0xb0] sm:$0xff]
        %v1439 = vld [vmem:[#allocation3 + $0xb8] sm:$0xff]
        %v1440 = vld [vmem:[#allocation3 + $0xc0] sm:$0xff]
        %v1441 = vld [vmem:[#allocation3 + $0xc8] sm:$0xff]
        %v1442 = vld [vmem:[#allocation3 + $0xd0] sm:$0xff]
        %v1443 = vld [vmem:[#allocation3 + $0xd8] sm:$0xff]
        %v1444 = vld [vmem:[#allocation3 + $0xe0] sm:$0xff]
        %v1445 = vld [vmem:[#allocation3 + $0xe8] sm:$0xff]
        %v1446 = vld [vmem:[#allocation3 + $0xf0] sm:$0xff]
        %v1447 = vld [vmem:[#allocation3 + $0xf8] sm:$0xff]
        %v1448 = vpack.c.bf16 %v1386, %v1384
        %v1449 = vpack.c.bf16 %v1387, %v1385
        %v1450 = vpack.c.bf16 %v1390, %v1388
        %v1451 = vpack.c.bf16 %v1391, %v1389
        %v1452 = vpack.c.bf16 %v1394, %v1392
        %v1453 = vpack.c.bf16 %v1395, %v1393
        %v1454 = vpack.c.bf16 %v1398, %v1396
        %v1455 = vpack.c.bf16 %v1399, %v1397
        %v1456 = vpack.c.bf16 %v1402, %v1400
        %v1457 = vpack.c.bf16 %v1403, %v1401
        %v1458 = vpack.c.bf16 %v1406, %v1404
        %v1459 = vpack.c.bf16 %v1407, %v1405
        %v1460 = vpack.c.bf16 %v1410, %v1408
        %v1461 = vpack.c.bf16 %v1411, %v1409
        %v1462 = vpack.c.bf16 %v1414, %v1412
        %v1463 = vpack.c.bf16 %v1415, %v1413
        %v1464 = vld [vmem:[%s571] sm:$0xff]
        %v1465 = vld [vmem:[%s571 + $0x8] sm:$0xff]
        %v1466 = vld [vmem:[%s571 + $0x10] sm:$0xff]
        %v1467 = vld [vmem:[%s571 + $0x18] sm:$0xff]
        %v1468 = vld [vmem:[%s571 + $0x20] sm:$0xff]
        %v1469 = vld [vmem:[%s571 + $0x28] sm:$0xff]
        %v1470 = vld [vmem:[%s571 + $0x30] sm:$0xff]
        %v1471 = vld [vmem:[%s571 + $0x38] sm:$0xff]
        %v1472 = vld [vmem:[%s571 + $0x40] sm:$0xff]
        %v1473 = vld [vmem:[%s571 + $0x48] sm:$0xff]
        %v1474 = vld [vmem:[%s571 + $0x50] sm:$0xff]
        %v1475 = vld [vmem:[%s571 + $0x58] sm:$0xff]
        %v1476 = vld [vmem:[%s571 + $0x60] sm:$0xff]
        %v1477 = vld [vmem:[%s571 + $0x68] sm:$0xff]
        %v1478 = vld [vmem:[%s571 + $0x70] sm:$0xff]
        %v1479 = vld [vmem:[%s571 + $0x78] sm:$0xff]
        %v1480 = vld [vmem:[%s571 + $0x80] sm:$0xff]
        %v1481 = vld [vmem:[%s571 + $0x88] sm:$0xff]
        %v1482 = vld [vmem:[%s571 + $0x90] sm:$0xff]
        %v1483 = vld [vmem:[%s571 + $0x98] sm:$0xff]
        %v1484 = vld [vmem:[%s571 + $0xa0] sm:$0xff]
        %v1485 = vld [vmem:[%s571 + $0xa8] sm:$0xff]
        %v1486 = vld [vmem:[%s571 + $0xb0] sm:$0xff]
        %v1487 = vld [vmem:[%s571 + $0xb8] sm:$0xff]
        %v1488 = vld [vmem:[%s571 + $0xc0] sm:$0xff]
        %v1489 = vld [vmem:[%s571 + $0xc8] sm:$0xff]
        %v1490 = vld [vmem:[%s571 + $0xd0] sm:$0xff]
        %v1491 = vld [vmem:[%s571 + $0xd8] sm:$0xff]
        %v1492 = vld [vmem:[%s571 + $0xe0] sm:$0xff]
        %v1493 = vld [vmem:[%s571 + $0xe8] sm:$0xff]
        %v1494 = vld [vmem:[%s571 + $0xf0] sm:$0xff]
        %v1495 = vld [vmem:[%s571 + $0xf8] sm:$0xff]
        %v1528 = vunpack.c.l.b16 %v1464
        %v1529 = vunpack.c.h.b16 %v1464
        %v1530 = vunpack.c.l.b16 %v1465
        %v1531 = vunpack.c.h.b16 %v1465
        %v1532 = vunpack.c.l.b16 %v1466
        %v1533 = vunpack.c.h.b16 %v1466
        %v1534 = vunpack.c.l.b16 %v1467
        %v1535 = vunpack.c.h.b16 %v1467
        %v1536 = vunpack.c.l.b16 %v1468
        %v1537 = vunpack.c.h.b16 %v1468
        %v1538 = vunpack.c.l.b16 %v1469
        %v1539 = vunpack.c.h.b16 %v1469
        %v1540 = vunpack.c.l.b16 %v1470
        %v1541 = vunpack.c.h.b16 %v1470
        %v1542 = vunpack.c.l.b16 %v1471
        %v1543 = vunpack.c.h.b16 %v1471
        %v1544 = vunpack.c.l.b16 %v1472
        %v1545 = vunpack.c.h.b16 %v1472
        %v1546 = vunpack.c.l.b16 %v1473
        %v1547 = vunpack.c.h.b16 %v1473
        %v1548 = vunpack.c.l.b16 %v1474
        %v1549 = vunpack.c.h.b16 %v1474
        %v1550 = vunpack.c.l.b16 %v1475
        %v1551 = vunpack.c.h.b16 %v1475
        %v1552 = vunpack.c.l.b16 %v1476
        %v1553 = vunpack.c.h.b16 %v1476
        %v1554 = vunpack.c.l.b16 %v1477
        %v1555 = vunpack.c.h.b16 %v1477
        %v1556 = vunpack.c.l.b16 %v1478
        %v1557 = vunpack.c.h.b16 %v1478
        %v1558 = vunpack.c.l.b16 %v1479
        %v1559 = vunpack.c.h.b16 %v1479
        %v1560 = vunpack.c.l.b16 %v1480
        %v1561 = vunpack.c.h.b16 %v1480
        %v1562 = vunpack.c.l.b16 %v1481
        %v1563 = vunpack.c.h.b16 %v1481
        %v1564 = vunpack.c.l.b16 %v1482
        %v1565 = vunpack.c.h.b16 %v1482
        %v1566 = vunpack.c.l.b16 %v1483
        %v1567 = vunpack.c.h.b16 %v1483
        %v1568 = vunpack.c.l.b16 %v1484
        %v1569 = vunpack.c.h.b16 %v1484
        %v1570 = vunpack.c.l.b16 %v1485
        %v1571 = vunpack.c.h.b16 %v1485
        %v1572 = vunpack.c.l.b16 %v1486
        %v1573 = vunpack.c.h.b16 %v1486
        %v1574 = vunpack.c.l.b16 %v1487
        %v1575 = vunpack.c.h.b16 %v1487
        %v1576 = vunpack.c.l.b16 %v1488
        %v1577 = vunpack.c.h.b16 %v1488
        %v1578 = vunpack.c.l.b16 %v1489
        %v1579 = vunpack.c.h.b16 %v1489
        %v1580 = vunpack.c.l.b16 %v1490
        %v1581 = vunpack.c.h.b16 %v1490
        %v1582 = vunpack.c.l.b16 %v1491
        %v1583 = vunpack.c.h.b16 %v1491
        %v1584 = vunpack.c.l.b16 %v1492
        %v1585 = vunpack.c.h.b16 %v1492
        %v1586 = vunpack.c.l.b16 %v1493
        %v1587 = vunpack.c.h.b16 %v1493
        %v1588 = vunpack.c.l.b16 %v1494
        %v1589 = vunpack.c.h.b16 %v1494
        %v1590 = vunpack.c.l.b16 %v1495
        %v1591 = vunpack.c.h.b16 %v1495
        %v1592 = vpack.c.b16 %v1530, %v1528
        %v1593 = vpack.c.b16 %v1531, %v1529
        %v1594 = vpack.c.b16 %v1534, %v1532
        %v1595 = vpack.c.b16 %v1535, %v1533
        %v1596 = vpack.c.b16 %v1538, %v1536
        %v1597 = vpack.c.b16 %v1539, %v1537
        %v1598 = vpack.c.b16 %v1542, %v1540
        %v1599 = vpack.c.b16 %v1543, %v1541
        %v1600 = vpack.c.b16 %v1546, %v1544
        %v1601 = vpack.c.b16 %v1547, %v1545
        %v1602 = vpack.c.b16 %v1550, %v1548
        %v1603 = vpack.c.b16 %v1551, %v1549
        %v1604 = vpack.c.b16 %v1554, %v1552
        %v1605 = vpack.c.b16 %v1555, %v1553
        %v1606 = vpack.c.b16 %v1558, %v1556
        %v1607 = vpack.c.b16 %v1559, %v1557
        %v1608 = vpack.c.b16 %v1562, %v1560
        %v1609 = vpack.c.b16 %v1563, %v1561
        %v1610 = vpack.c.b16 %v1566, %v1564
        %v1611 = vpack.c.b16 %v1567, %v1565
        %v1612 = vpack.c.b16 %v1570, %v1568
        %v1613 = vpack.c.b16 %v1571, %v1569
        %v1614 = vpack.c.b16 %v1574, %v1572
        %v1615 = vpack.c.b16 %v1575, %v1573
        %v1616 = vpack.c.b16 %v1578, %v1576
        %v1617 = vpack.c.b16 %v1579, %v1577
        %v1618 = vpack.c.b16 %v1582, %v1580
        %v1619 = vpack.c.b16 %v1583, %v1581
        %v1620 = vpack.c.b16 %v1586, %v1584
        %v1621 = vpack.c.b16 %v1587, %v1585
        %v1622 = vpack.c.b16 %v1590, %v1588
        %v1623 = vpack.c.b16 %v1591, %v1589
        %1656 = vmatprep.subr.bf16.mxu0 %v1607
        %1657 = vmatpush1.bf16.msra.mxu0 %v1606
        %1658 = vmatprep.subr.bf16.mxu0 %v1605
        %1659 = vmatpush1.bf16.msra.mxu0 %v1604
        %1660 = vmatprep.subr.bf16.mxu0 %v1603
        %1661 = vmatpush1.bf16.msra.mxu0 %v1602
        %1662 = vmatprep.subr.bf16.mxu0 %v1601
        %1663 = vmatpush1.bf16.msra.mxu0 %v1600
        %1664 = vmatprep.subr.bf16.mxu0 %v1599
        %1665 = vmatpush1.bf16.msra.mxu0 %v1598
        %1666 = vmatprep.subr.bf16.mxu0 %v1597
        %1667 = vmatpush1.bf16.msra.mxu0 %v1596
        %1668 = vmatprep.subr.bf16.mxu0 %v1595
        %1669 = vmatpush1.bf16.msra.mxu0 %v1594
        %1670 = vmatprep.subr.bf16.mxu0 %v1593
        %1671 = vmatpush1.bf16.msra.mxu0 %v1592
        %1672 = vmatprep.subr.bf16.mxu0 %v1623
        %1673 = vmatpush2.bf16.msra.mxu0 %v1622
        %1674 = vmatprep.subr.bf16.mxu0 %v1621
        %1675 = vmatpush2.bf16.msra.mxu0 %v1620
        %1676 = vmatprep.subr.bf16.mxu0 %v1619
        %1677 = vmatpush2.bf16.msra.mxu0 %v1618
        %1678 = vmatprep.subr.bf16.mxu0 %v1617
        %1679 = vmatpush2.bf16.msra.mxu0 %v1616
        %1680 = vmatprep.subr.bf16.mxu0 %v1615
        %1681 = vmatpush2.bf16.msra.mxu0 %v1614
        %1682 = vmatprep.subr.bf16.mxu0 %v1613
        %1683 = vmatpush2.bf16.msra.mxu0 %v1612
        %1684 = vmatprep.subr.bf16.mxu0 %v1611
        %1685 = vmatpush2.bf16.msra.mxu0 %v1610
        %1686 = vmatprep.subr.bf16.mxu0 %v1609
        %1687 = vmatpush2.bf16.msra.mxu0 %v1608
        %1688 = vmatprep.mubr.bf16.mxu0 %v1449
        %1689 = vmatmul.mubr.bf16.gmra.mxu0 %v1448
        %v1690 = vpop.f32.mrf.mxu0
        %v1691 = vadd.f32 0.0, %v1690
        %v1692 = vpop.f32.mrf.mxu0
        %v1693 = vadd.f32 0.0, %v1692
        %v1694 = vpop.f32.mrf.mxu0
        %v1695 = vadd.f32 0.0, %v1694
        %v1696 = vpop.f32.mrf.mxu0
        %v1697 = vadd.f32 0.0, %v1696
        %1698 = vmatprep.mubr.bf16.mxu0 %v1451
        %1699 = vmatmul.mubr.bf16.gmra.mxu0 %v1450
        %v1700 = vpop.f32.mrf.mxu0
        %v1701 = vadd.f32 0.0, %v1700
        %v1702 = vpop.f32.mrf.mxu0
        %v1703 = vadd.f32 0.0, %v1702
        %v1704 = vpop.f32.mrf.mxu0
        %v1705 = vadd.f32 0.0, %v1704
        %v1706 = vpop.f32.mrf.mxu0
        %v1707 = vadd.f32 0.0, %v1706
        %1708 = vmatprep.mubr.bf16.mxu0 %v1453
        %1709 = vmatmul.mubr.bf16.gmra.mxu0 %v1452
        %v1710 = vpop.f32.mrf.mxu0
        %v1711 = vadd.f32 0.0, %v1710
        %v1712 = vpop.f32.mrf.mxu0
        %v1713 = vadd.f32 0.0, %v1712
        %v1714 = vpop.f32.mrf.mxu0
        %v1715 = vadd.f32 0.0, %v1714
        %v1716 = vpop.f32.mrf.mxu0
        %v1717 = vadd.f32 0.0, %v1716
        %1718 = vmatprep.mubr.bf16.mxu0 %v1455
        %1719 = vmatmul.mubr.bf16.gmra.mxu0 %v1454
        %v1720 = vpop.f32.mrf.mxu0
        %v1721 = vadd.f32 0.0, %v1720
        %v1722 = vpop.f32.mrf.mxu0
        %v1723 = vadd.f32 0.0, %v1722
        %v1724 = vpop.f32.mrf.mxu0
        %v1725 = vadd.f32 0.0, %v1724
        %v1726 = vpop.f32.mrf.mxu0
        %v1727 = vadd.f32 0.0, %v1726
        %1728 = vmatprep.mubr.bf16.mxu0 %v1457
        %1729 = vmatmul.mubr.bf16.gmra.mxu0 %v1456
        %v1730 = vpop.f32.mrf.mxu0
        %v1731 = vadd.f32 0.0, %v1730
        %v1732 = vpop.f32.mrf.mxu0
        %v1733 = vadd.f32 0.0, %v1732
        %v1734 = vpop.f32.mrf.mxu0
        %v1735 = vadd.f32 0.0, %v1734
        %v1736 = vpop.f32.mrf.mxu0
        %v1737 = vadd.f32 0.0, %v1736
        %1738 = vmatprep.mubr.bf16.mxu0 %v1459
        %1739 = vmatmul.mubr.bf16.gmra.mxu0 %v1458
        %v1740 = vpop.f32.mrf.mxu0
        %v1741 = vadd.f32 0.0, %v1740
        %v1742 = vpop.f32.mrf.mxu0
        %v1743 = vadd.f32 0.0, %v1742
        %v1744 = vpop.f32.mrf.mxu0
        %v1745 = vadd.f32 0.0, %v1744
        %v1746 = vpop.f32.mrf.mxu0
        %v1747 = vadd.f32 0.0, %v1746
        %1748 = vmatprep.mubr.bf16.mxu0 %v1461
        %1749 = vmatmul.mubr.bf16.gmra.mxu0 %v1460
        %v1750 = vpop.f32.mrf.mxu0
        %v1751 = vadd.f32 0.0, %v1750
        %v1752 = vpop.f32.mrf.mxu0
        %v1753 = vadd.f32 0.0, %v1752
        %v1754 = vpop.f32.mrf.mxu0
        %v1755 = vadd.f32 0.0, %v1754
        %v1756 = vpop.f32.mrf.mxu0
        %v1757 = vadd.f32 0.0, %v1756
        %1758 = vmatprep.mubr.bf16.mxu0 %v1463
        %1759 = vmatmul.mubr.bf16.gmra.mxu0 %v1462
        %v1760 = vpop.f32.mrf.mxu0
        %v1761 = vadd.f32 0.0, %v1760
        %v1762 = vpop.f32.mrf.mxu0
        %v1763 = vadd.f32 0.0, %v1762
        %v1764 = vpop.f32.mrf.mxu0
        %v1765 = vadd.f32 0.0, %v1764
        %v1766 = vpop.f32.mrf.mxu0
        %v1767 = vadd.f32 0.0, %v1766
        %1768 = vdwg.mxu0
        %v1769 = vadd.f32 %v1416, %v1691
        %v1770 = vadd.f32 %v1417, %v1693
        %v1771 = vadd.f32 %v1418, %v1695
        %v1772 = vadd.f32 %v1419, %v1697
        %v1773 = vadd.f32 %v1420, %v1701
        %v1774 = vadd.f32 %v1421, %v1703
        %v1775 = vadd.f32 %v1422, %v1705
        %v1776 = vadd.f32 %v1423, %v1707
        %v1777 = vadd.f32 %v1424, %v1711
        %v1778 = vadd.f32 %v1425, %v1713
        %v1779 = vadd.f32 %v1426, %v1715
        %v1780 = vadd.f32 %v1427, %v1717
        %v1781 = vadd.f32 %v1428, %v1721
        %v1782 = vadd.f32 %v1429, %v1723
        %v1783 = vadd.f32 %v1430, %v1725
        %v1784 = vadd.f32 %v1431, %v1727
        %v1785 = vadd.f32 %v1432, %v1731
        %v1786 = vadd.f32 %v1433, %v1733
        %v1787 = vadd.f32 %v1434, %v1735
        %v1788 = vadd.f32 %v1435, %v1737
        %v1789 = vadd.f32 %v1436, %v1741
        %v1790 = vadd.f32 %v1437, %v1743
        %v1791 = vadd.f32 %v1438, %v1745
        %v1792 = vadd.f32 %v1439, %v1747
        %v1793 = vadd.f32 %v1440, %v1751
        %v1794 = vadd.f32 %v1441, %v1753
        %v1795 = vadd.f32 %v1442, %v1755
        %v1796 = vadd.f32 %v1443, %v1757
        %v1797 = vadd.f32 %v1444, %v1761
        %v1798 = vadd.f32 %v1445, %v1763
        %v1799 = vadd.f32 %v1446, %v1765
        %v1800 = vadd.f32 %v1447, %v1767
        %1801 = vst [vmem:[#allocation3] sm:$0xff] %v1769
        %1802 = vst [vmem:[#allocation3 + $0x8] sm:$0xff] %v1770
        %1803 = vst [vmem:[#allocation3 + $0x10] sm:$0xff] %v1771
        %1804 = vst [vmem:[#allocation3 + $0x18] sm:$0xff] %v1772
        %1805 = vst [vmem:[#allocation3 + $0x20] sm:$0xff] %v1773
        %1806 = vst [vmem:[#allocation3 + $0x28] sm:$0xff] %v1774
        %1807 = vst [vmem:[#allocation3 + $0x30] sm:$0xff] %v1775
        %1808 = vst [vmem:[#allocation3 + $0x38] sm:$0xff] %v1776
        %1809 = vst [vmem:[#allocation3 + $0x40] sm:$0xff] %v1777
        %1810 = vst [vmem:[#allocation3 + $0x48] sm:$0xff] %v1778
        %1811 = vst [vmem:[#allocation3 + $0x50] sm:$0xff] %v1779
        %1812 = vst [vmem:[#allocation3 + $0x58] sm:$0xff] %v1780
        %1813 = vst [vmem:[#allocation3 + $0x60] sm:$0xff] %v1781
        %1814 = vst [vmem:[#allocation3 + $0x68] sm:$0xff] %v1782
        %1815 = vst [vmem:[#allocation3 + $0x70] sm:$0xff] %v1783
        %1816 = vst [vmem:[#allocation3 + $0x78] sm:$0xff] %v1784
        %1817 = vst [vmem:[#allocation3 + $0x80] sm:$0xff] %v1785
        %1818 = vst [vmem:[#allocation3 + $0x88] sm:$0xff] %v1786
        %1819 = vst [vmem:[#allocation3 + $0x90] sm:$0xff] %v1787
        %1820 = vst [vmem:[#allocation3 + $0x98] sm:$0xff] %v1788
        %1821 = vst [vmem:[#allocation3 + $0xa0] sm:$0xff] %v1789
        %1822 = vst [vmem:[#allocation3 + $0xa8] sm:$0xff] %v1790
        %1823 = vst [vmem:[#allocation3 + $0xb0] sm:$0xff] %v1791
        %1824 = vst [vmem:[#allocation3 + $0xb8] sm:$0xff] %v1792
        %1825 = vst [vmem:[#allocation3 + $0xc0] sm:$0xff] %v1793
        %1826 = vst [vmem:[#allocation3 + $0xc8] sm:$0xff] %v1794
        %1827 = vst [vmem:[#allocation3 + $0xd0] sm:$0xff] %v1795
        %1828 = vst [vmem:[#allocation3 + $0xd8] sm:$0xff] %v1796
        %1829 = vst [vmem:[#allocation3 + $0xe0] sm:$0xff] %v1797
        %1830 = vst [vmem:[#allocation3 + $0xe8] sm:$0xff] %v1798
        %1831 = vst [vmem:[#allocation3 + $0xf0] sm:$0xff] %v1799
        %1832 = vst [vmem:[#allocation3 + $0xf8] sm:$0xff] %v1800
        %p1833 = scmp.eq.s32.totalorder %s28, 1
        // Predicated region
        $region99: #{retrieval_head.1} parent=89 // pred_check
          %p1834 = pneg %p1833
        $region100: #{retrieval_head.1} parent=89 // pred_check_branch
          %1836 = sbr.rel (%p1834) target = $region102
        $region101: #{retrieval_head.1} parent=89 // pred_region
          %v1837 = vld [vmem:[#allocation2] sm:$0xff]
          %v1838 = vld [vmem:[#allocation2 + $0x8] sm:$0xff]
          %v1839 = vld [vmem:[#allocation2 + $0x10] sm:$0xff]
          %v1840 = vld [vmem:[#allocation2 + $0x18] sm:$0xff]
          %v1841 = vld [vmem:[#allocation2 + $0x20] sm:$0xff]
          %v1842 = vld [vmem:[#allocation2 + $0x28] sm:$0xff]
          %v1843 = vld [vmem:[#allocation2 + $0x30] sm:$0xff]
          %v1844 = vld [vmem:[#allocation2 + $0x38] sm:$0xff]
          %v1845 = vld [vmem:[#allocation2 + $0x40] sm:$0xff]
          %v1846 = vld [vmem:[#allocation2 + $0x48] sm:$0xff]
          %v1847 = vld [vmem:[#allocation2 + $0x50] sm:$0xff]
          %v1848 = vld [vmem:[#allocation2 + $0x58] sm:$0xff]
          %v1849 = vld [vmem:[#allocation2 + $0x60] sm:$0xff]
          %v1850 = vld [vmem:[#allocation2 + $0x68] sm:$0xff]
          %v1851 = vld [vmem:[#allocation2 + $0x70] sm:$0xff]
          %v1852 = vld [vmem:[#allocation2 + $0x78] sm:$0xff]
          %v1853 = vld [vmem:[#allocation2 + $0x80] sm:$0xff]
          %v1854 = vld [vmem:[#allocation2 + $0x88] sm:$0xff]
          %v1855 = vld [vmem:[#allocation2 + $0x90] sm:$0xff]
          %v1856 = vld [vmem:[#allocation2 + $0x98] sm:$0xff]
          %v1857 = vld [vmem:[#allocation2 + $0xa0] sm:$0xff]
          %v1858 = vld [vmem:[#allocation2 + $0xa8] sm:$0xff]
          %v1859 = vld [vmem:[#allocation2 + $0xb0] sm:$0xff]
          %v1860 = vld [vmem:[#allocation2 + $0xb8] sm:$0xff]
          %v1861 = vld [vmem:[#allocation2 + $0xc0] sm:$0xff]
          %v1862 = vld [vmem:[#allocation2 + $0xc8] sm:$0xff]
          %v1863 = vld [vmem:[#allocation2 + $0xd0] sm:$0xff]
          %v1864 = vld [vmem:[#allocation2 + $0xd8] sm:$0xff]
          %v1865 = vld [vmem:[#allocation2 + $0xe0] sm:$0xff]
          %v1866 = vld [vmem:[#allocation2 + $0xe8] sm:$0xff]
          %v1867 = vld [vmem:[#allocation2 + $0xf0] sm:$0xff]
          %v1868 = vld [vmem:[#allocation2 + $0xf8] sm:$0xff]
          %v1869 = vld [vmem:[#allocation3] sm:$0xff]
          %v1870 = vld [vmem:[#allocation3 + $0x8] sm:$0xff]
          %v1871 = vld [vmem:[#allocation3 + $0x10] sm:$0xff]
          %v1872 = vld [vmem:[#allocation3 + $0x18] sm:$0xff]
          %v1873 = vld [vmem:[#allocation3 + $0x20] sm:$0xff]
          %v1874 = vld [vmem:[#allocation3 + $0x28] sm:$0xff]
          %v1875 = vld [vmem:[#allocation3 + $0x30] sm:$0xff]
          %v1876 = vld [vmem:[#allocation3 + $0x38] sm:$0xff]
          %v1877 = vld [vmem:[#allocation3 + $0x40] sm:$0xff]
          %v1878 = vld [vmem:[#allocation3 + $0x48] sm:$0xff]
          %v1879 = vld [vmem:[#allocation3 + $0x50] sm:$0xff]
          %v1880 = vld [vmem:[#allocation3 + $0x58] sm:$0xff]
          %v1881 = vld [vmem:[#allocation3 + $0x60] sm:$0xff]
          %v1882 = vld [vmem:[#allocation3 + $0x68] sm:$0xff]
          %v1883 = vld [vmem:[#allocation3 + $0x70] sm:$0xff]
          %v1884 = vld [vmem:[#allocation3 + $0x78] sm:$0xff]
          %v1885 = vld [vmem:[#allocation3 + $0x80] sm:$0xff]
          %v1886 = vld [vmem:[#allocation3 + $0x88] sm:$0xff]
          %v1887 = vld [vmem:[#allocation3 + $0x90] sm:$0xff]
          %v1888 = vld [vmem:[#allocation3 + $0x98] sm:$0xff]
          %v1889 = vld [vmem:[#allocation3 + $0xa0] sm:$0xff]
          %v1890 = vld [vmem:[#allocation3 + $0xa8] sm:$0xff]
          %v1891 = vld [vmem:[#allocation3 + $0xb0] sm:$0xff]
          %v1892 = vld [vmem:[#allocation3 + $0xb8] sm:$0xff]
          %v1893 = vld [vmem:[#allocation3 + $0xc0] sm:$0xff]
          %v1894 = vld [vmem:[#allocation3 + $0xc8] sm:$0xff]
          %v1895 = vld [vmem:[#allocation3 + $0xd0] sm:$0xff]
          %v1896 = vld [vmem:[#allocation3 + $0xd8] sm:$0xff]
          %v1897 = vld [vmem:[#allocation3 + $0xe0] sm:$0xff]
          %v1898 = vld [vmem:[#allocation3 + $0xe8] sm:$0xff]
          %v1899 = vld [vmem:[#allocation3 + $0xf0] sm:$0xff]
          %v1900 = vld [vmem:[#allocation3 + $0xf8] sm:$0xff]
          %v1901 = vadd.f32 %v1837, %v1869
          %v1902 = vadd.f32 %v1838, %v1870
          %v1903 = vadd.f32 %v1839, %v1871
          %v1904 = vadd.f32 %v1840, %v1872
          %v1905 = vadd.f32 %v1841, %v1873
          %v1906 = vadd.f32 %v1842, %v1874
          %v1907 = vadd.f32 %v1843, %v1875
          %v1908 = vadd.f32 %v1844, %v1876
          %v1909 = vadd.f32 %v1845, %v1877
          %v1910 = vadd.f32 %v1846, %v1878
          %v1911 = vadd.f32 %v1847, %v1879
          %v1912 = vadd.f32 %v1848, %v1880
          %v1913 = vadd.f32 %v1849, %v1881
          %v1914 = vadd.f32 %v1850, %v1882
          %v1915 = vadd.f32 %v1851, %v1883
          %v1916 = vadd.f32 %v1852, %v1884
          %v1917 = vadd.f32 %v1853, %v1885
          %v1918 = vadd.f32 %v1854, %v1886
          %v1919 = vadd.f32 %v1855, %v1887
          %v1920 = vadd.f32 %v1856, %v1888
          %v1921 = vadd.f32 %v1857, %v1889
          %v1922 = vadd.f32 %v1858, %v1890
          %v1923 = vadd.f32 %v1859, %v1891
          %v1924 = vadd.f32 %v1860, %v1892
          %v1925 = vadd.f32 %v1861, %v1893
          %v1926 = vadd.f32 %v1862, %v1894
          %v1927 = vadd.f32 %v1863, %v1895
          %v1928 = vadd.f32 %v1864, %v1896
          %v1929 = vadd.f32 %v1865, %v1897
          %v1930 = vadd.f32 %v1866, %v1898
          %v1931 = vadd.f32 %v1867, %v1899
          %v1932 = vadd.f32 %v1868, %v1900
          %v1933 = vld [vmem:[%s6] sm:$0x3]
          %v1935 = vlaneseq
          %v1936 = vshrl.u32 %v1935, 7
          %v1937 = vsub.s32 0, %v1936
          %v1938 = vrot.slane %v1933, %v1937
          %v1939 = vlaneseq
          %v1940 = vshrl.u32 %v1939, 7
          %v1941 = vsub.s32 1, %v1940
          %v1942 = vrot.slane %v1933, %v1941
          %v1945 = vadd.f32 %v1901, %v1938
          %v1946 = vadd.f32 %v1902, %v1942
          %v1947 = vadd.f32 %v1903, %v1938
          %v1948 = vadd.f32 %v1904, %v1942
          %v1949 = vadd.f32 %v1905, %v1938
          %v1950 = vadd.f32 %v1906, %v1942
          %v1951 = vadd.f32 %v1907, %v1938
          %v1952 = vadd.f32 %v1908, %v1942
          %v1953 = vadd.f32 %v1909, %v1938
          %v1954 = vadd.f32 %v1910, %v1942
          %v1955 = vadd.f32 %v1911, %v1938
          %v1956 = vadd.f32 %v1912, %v1942
          %v1957 = vadd.f32 %v1913, %v1938
          %v1958 = vadd.f32 %v1914, %v1942
          %v1959 = vadd.f32 %v1915, %v1938
          %v1960 = vadd.f32 %v1916, %v1942
          %v1961 = vadd.f32 %v1917, %v1938
          %v1962 = vadd.f32 %v1918, %v1942
          %v1963 = vadd.f32 %v1919, %v1938
          %v1964 = vadd.f32 %v1920, %v1942
          %v1965 = vadd.f32 %v1921, %v1938
          %v1966 = vadd.f32 %v1922, %v1942
          %v1967 = vadd.f32 %v1923, %v1938
          %v1968 = vadd.f32 %v1924, %v1942
          %v1969 = vadd.f32 %v1925, %v1938
          %v1970 = vadd.f32 %v1926, %v1942
          %v1971 = vadd.f32 %v1927, %v1938
          %v1972 = vadd.f32 %v1928, %v1942
          %v1973 = vadd.f32 %v1929, %v1938
          %v1974 = vadd.f32 %v1930, %v1942
          %v1975 = vadd.f32 %v1931, %v1938
          %v1976 = vadd.f32 %v1932, %v1942
          %v1977 = vadd.f32 %v1945, %v1946
          %1978 = vadd.xlane.f32.xlu0 %v1977
          %v1979 = vpop.xlane.xlu0 %1978
          %v1980 = vadd.f32 %v1947, %v1948
          %1981 = vadd.xlane.f32.xlu0 %v1980
          %v1982 = vpop.xlane.xlu0 %1981
          %v1983 = vadd.f32 %v1949, %v1950
          %1984 = vadd.xlane.f32.xlu0 %v1983
          %v1985 = vpop.xlane.xlu0 %1984
          %v1986 = vadd.f32 %v1951, %v1952
          %1987 = vadd.xlane.f32.xlu0 %v1986
          %v1988 = vpop.xlane.xlu0 %1987
          %v1989 = vadd.f32 %v1953, %v1954
          %1990 = vadd.xlane.f32.xlu0 %v1989
          %v1991 = vpop.xlane.xlu0 %1990
          %v1992 = vadd.f32 %v1955, %v1956
          %1993 = vadd.xlane.f32.xlu0 %v1992
          %v1994 = vpop.xlane.xlu0 %1993
          %v1995 = vadd.f32 %v1957, %v1958
          %1996 = vadd.xlane.f32.xlu0 %v1995
          %v1997 = vpop.xlane.xlu0 %1996
          %v1998 = vadd.f32 %v1959, %v1960
          %1999 = vadd.xlane.f32.xlu0 %v1998
          %v2000 = vpop.xlane.xlu0 %1999
          %v2001 = vadd.f32 %v1961, %v1962
          %2002 = vadd.xlane.f32.xlu0 %v2001
          %v2003 = vpop.xlane.xlu0 %2002
          %v2004 = vadd.f32 %v1963, %v1964
          %2005 = vadd.xlane.f32.xlu0 %v2004
          %v2006 = vpop.xlane.xlu0 %2005
          %v2007 = vadd.f32 %v1965, %v1966
          %2008 = vadd.xlane.f32.xlu0 %v2007
          %v2009 = vpop.xlane.xlu0 %2008
          %v2010 = vadd.f32 %v1967, %v1968
          %2011 = vadd.xlane.f32.xlu0 %v2010
          %v2012 = vpop.xlane.xlu0 %2011
          %v2013 = vadd.f32 %v1969, %v1970
          %2014 = vadd.xlane.f32.xlu0 %v2013
          %v2015 = vpop.xlane.xlu0 %2014
          %v2016 = vadd.f32 %v1971, %v1972
          %2017 = vadd.xlane.f32.xlu0 %v2016
          %v2018 = vpop.xlane.xlu0 %2017
          %v2019 = vadd.f32 %v1973, %v1974
          %2020 = vadd.xlane.f32.xlu0 %v2019
          %v2021 = vpop.xlane.xlu0 %2020
          %v2022 = vadd.f32 %v1975, %v1976
          %2023 = vadd.xlane.f32.xlu0 %v2022
          %v2024 = vpop.xlane.xlu0 %2023
          %v2025 = vrcp.pop 256.0
          %v2026 = vmul.f32 %v1979, %v2025
          %v2027 = vmul.f32 %v1982, %v2025
          %v2028 = vmul.f32 %v1985, %v2025
          %v2029 = vmul.f32 %v1988, %v2025
          %v2030 = vmul.f32 %v1991, %v2025
          %v2031 = vmul.f32 %v1994, %v2025
          %v2032 = vmul.f32 %v1997, %v2025
          %v2033 = vmul.f32 %v2000, %v2025
          %v2034 = vmul.f32 %v2003, %v2025
          %v2035 = vmul.f32 %v2006, %v2025
          %v2036 = vmul.f32 %v2009, %v2025
          %v2037 = vmul.f32 %v2012, %v2025
          %v2038 = vmul.f32 %v2015, %v2025
          %v2039 = vmul.f32 %v2018, %v2025
          %v2040 = vmul.f32 %v2021, %v2025
          %v2041 = vmul.f32 %v2024, %v2025
          %v2042 = vsub.f32 %v1945, %v2026
          %v2043 = vsub.f32 %v1946, %v2026
          %v2044 = vsub.f32 %v1947, %v2027
          %v2045 = vsub.f32 %v1948, %v2027
          %v2046 = vsub.f32 %v1949, %v2028
          %v2047 = vsub.f32 %v1950, %v2028
          %v2048 = vsub.f32 %v1951, %v2029
          %v2049 = vsub.f32 %v1952, %v2029
          %v2050 = vsub.f32 %v1953, %v2030
          %v2051 = vsub.f32 %v1954, %v2030
          %v2052 = vsub.f32 %v1955, %v2031
          %v2053 = vsub.f32 %v1956, %v2031
          %v2054 = vsub.f32 %v1957, %v2032
          %v2055 = vsub.f32 %v1958, %v2032
          %v2056 = vsub.f32 %v1959, %v2033
          %v2057 = vsub.f32 %v1960, %v2033
          %v2058 = vsub.f32 %v1961, %v2034
          %v2059 = vsub.f32 %v1962, %v2034
          %v2060 = vsub.f32 %v1963, %v2035
          %v2061 = vsub.f32 %v1964, %v2035
          %v2062 = vsub.f32 %v1965, %v2036
          %v2063 = vsub.f32 %v1966, %v2036
          %v2064 = vsub.f32 %v1967, %v2037
          %v2065 = vsub.f32 %v1968, %v2037
          %v2066 = vsub.f32 %v1969, %v2038
          %v2067 = vsub.f32 %v1970, %v2038
          %v2068 = vsub.f32 %v1971, %v2039
          %v2069 = vsub.f32 %v1972, %v2039
          %v2070 = vsub.f32 %v1973, %v2040
          %v2071 = vsub.f32 %v1974, %v2040
          %v2072 = vsub.f32 %v1975, %v2041
          %v2073 = vsub.f32 %v1976, %v2041
          %v2074 = vmul.f32 %v2042, %v2042
          %v2075 = vmul.f32 %v2043, %v2043
          %v2076 = vmul.f32 %v2044, %v2044
          %v2077 = vmul.f32 %v2045, %v2045
          %v2078 = vmul.f32 %v2046, %v2046
          %v2079 = vmul.f32 %v2047, %v2047
          %v2080 = vmul.f32 %v2048, %v2048
          %v2081 = vmul.f32 %v2049, %v2049
          %v2082 = vmul.f32 %v2050, %v2050
          %v2083 = vmul.f32 %v2051, %v2051
          %v2084 = vmul.f32 %v2052, %v2052
          %v2085 = vmul.f32 %v2053, %v2053
          %v2086 = vmul.f32 %v2054, %v2054
          %v2087 = vmul.f32 %v2055, %v2055
          %v2088 = vmul.f32 %v2056, %v2056
          %v2089 = vmul.f32 %v2057, %v2057
          %v2090 = vmul.f32 %v2058, %v2058
          %v2091 = vmul.f32 %v2059, %v2059
          %v2092 = vmul.f32 %v2060, %v2060
          %v2093 = vmul.f32 %v2061, %v2061
          %v2094 = vmul.f32 %v2062, %v2062
          %v2095 = vmul.f32 %v2063, %v2063
          %v2096 = vmul.f32 %v2064, %v2064
          %v2097 = vmul.f32 %v2065, %v2065
          %v2098 = vmul.f32 %v2066, %v2066
          %v2099 = vmul.f32 %v2067, %v2067
          %v2100 = vmul.f32 %v2068, %v2068
          %v2101 = vmul.f32 %v2069, %v2069
          %v2102 = vmul.f32 %v2070, %v2070
          %v2103 = vmul.f32 %v2071, %v2071
          %v2104 = vmul.f32 %v2072, %v2072
          %v2105 = vmul.f32 %v2073, %v2073
          %v2106 = vadd.f32 %v2074, %v2075
          %2107 = vadd.xlane.f32.xlu0 %v2106
          %v2108 = vpop.xlane.xlu0 %2107
          %v2109 = vadd.f32 %v2076, %v2077
          %2110 = vadd.xlane.f32.xlu0 %v2109
          %v2111 = vpop.xlane.xlu0 %2110
          %v2112 = vadd.f32 %v2078, %v2079
          %2113 = vadd.xlane.f32.xlu0 %v2112
          %v2114 = vpop.xlane.xlu0 %2113
          %v2115 = vadd.f32 %v2080, %v2081
          %2116 = vadd.xlane.f32.xlu0 %v2115
          %v2117 = vpop.xlane.xlu0 %2116
          %v2118 = vadd.f32 %v2082, %v2083
          %2119 = vadd.xlane.f32.xlu0 %v2118
          %v2120 = vpop.xlane.xlu0 %2119
          %v2121 = vadd.f32 %v2084, %v2085
          %2122 = vadd.xlane.f32.xlu0 %v2121
          %v2123 = vpop.xlane.xlu0 %2122
          %v2124 = vadd.f32 %v2086, %v2087
          %2125 = vadd.xlane.f32.xlu0 %v2124
          %v2126 = vpop.xlane.xlu0 %2125
          %v2127 = vadd.f32 %v2088, %v2089
          %2128 = vadd.xlane.f32.xlu0 %v2127
          %v2129 = vpop.xlane.xlu0 %2128
          %v2130 = vadd.f32 %v2090, %v2091
          %2131 = vadd.xlane.f32.xlu0 %v2130
          %v2132 = vpop.xlane.xlu0 %2131
          %v2133 = vadd.f32 %v2092, %v2093
          %2134 = vadd.xlane.f32.xlu0 %v2133
          %v2135 = vpop.xlane.xlu0 %2134
          %v2136 = vadd.f32 %v2094, %v2095
          %2137 = vadd.xlane.f32.xlu0 %v2136
          %v2138 = vpop.xlane.xlu0 %2137
          %v2139 = vadd.f32 %v2096, %v2097
          %2140 = vadd.xlane.f32.xlu0 %v2139
          %v2141 = vpop.xlane.xlu0 %2140
          %v2142 = vadd.f32 %v2098, %v2099
          %2143 = vadd.xlane.f32.xlu0 %v2142
          %v2144 = vpop.xlane.xlu0 %2143
          %v2145 = vadd.f32 %v2100, %v2101
          %2146 = vadd.xlane.f32.xlu0 %v2145
          %v2147 = vpop.xlane.xlu0 %2146
          %v2148 = vadd.f32 %v2102, %v2103
          %2149 = vadd.xlane.f32.xlu0 %v2148
          %v2150 = vpop.xlane.xlu0 %2149
          %v2151 = vadd.f32 %v2104, %v2105
          %2152 = vadd.xlane.f32.xlu0 %v2151
          %v2153 = vpop.xlane.xlu0 %2152
          %v2154 = vmul.f32 %v2108, %v2025
          %v2155 = vmul.f32 %v2111, %v2025
          %v2156 = vmul.f32 %v2114, %v2025
          %v2157 = vmul.f32 %v2117, %v2025
          %v2158 = vmul.f32 %v2120, %v2025
          %v2159 = vmul.f32 %v2123, %v2025
          %v2160 = vmul.f32 %v2126, %v2025
          %v2161 = vmul.f32 %v2129, %v2025
          %v2162 = vmul.f32 %v2132, %v2025
          %v2163 = vmul.f32 %v2135, %v2025
          %v2164 = vmul.f32 %v2138, %v2025
          %v2165 = vmul.f32 %v2141, %v2025
          %v2166 = vmul.f32 %v2144, %v2025
          %v2167 = vmul.f32 %v2147, %v2025
          %v2168 = vmul.f32 %v2150, %v2025
          %v2169 = vmul.f32 %v2153, %v2025
          %v2170 = vadd.f32 %v2154, 1e-05
          %v2171 = vadd.f32 %v2155, 1e-05
          %v2172 = vadd.f32 %v2156, 1e-05
          %v2173 = vadd.f32 %v2157, 1e-05
          %v2174 = vadd.f32 %v2158, 1e-05
          %v2175 = vadd.f32 %v2159, 1e-05
          %v2176 = vadd.f32 %v2160, 1e-05
          %v2177 = vadd.f32 %v2161, 1e-05
          %v2178 = vadd.f32 %v2162, 1e-05
          %v2179 = vadd.f32 %v2163, 1e-05
          %v2180 = vadd.f32 %v2164, 1e-05
          %v2181 = vadd.f32 %v2165, 1e-05
          %v2182 = vadd.f32 %v2166, 1e-05
          %v2183 = vadd.f32 %v2167, 1e-05
          %v2184 = vadd.f32 %v2168, 1e-05
          %v2185 = vadd.f32 %v2169, 1e-05
          %v2186 = vrsqrt.pop %v2170
          %v2187 = vrsqrt.pop %v2171
          %v2188 = vrsqrt.pop %v2172
          %v2189 = vrsqrt.pop %v2173
          %v2190 = vrsqrt.pop %v2174
          %v2191 = vrsqrt.pop %v2175
          %v2192 = vrsqrt.pop %v2176
          %v2193 = vrsqrt.pop %v2177
          %v2194 = vrsqrt.pop %v2178
          %v2195 = vrsqrt.pop %v2179
          %v2196 = vrsqrt.pop %v2180
          %v2197 = vrsqrt.pop %v2181
          %v2198 = vrsqrt.pop %v2182
          %v2199 = vrsqrt.pop %v2183
          %v2200 = vrsqrt.pop %v2184
          %v2201 = vrsqrt.pop %v2185
          %v2202 = vmul.f32 %v2042, %v2186
          %v2203 = vmul.f32 %v2043, %v2186
          %v2204 = vmul.f32 %v2044, %v2187
          %v2205 = vmul.f32 %v2045, %v2187
          %v2206 = vmul.f32 %v2046, %v2188
          %v2207 = vmul.f32 %v2047, %v2188
          %v2208 = vmul.f32 %v2048, %v2189
          %v2209 = vmul.f32 %v2049, %v2189
          %v2210 = vmul.f32 %v2050, %v2190
          %v2211 = vmul.f32 %v2051, %v2190
          %v2212 = vmul.f32 %v2052, %v2191
          %v2213 = vmul.f32 %v2053, %v2191
          %v2214 = vmul.f32 %v2054, %v2192
          %v2215 = vmul.f32 %v2055, %v2192
          %v2216 = vmul.f32 %v2056, %v2193
          %v2217 = vmul.f32 %v2057, %v2193
          %v2218 = vmul.f32 %v2058, %v2194
          %v2219 = vmul.f32 %v2059, %v2194
          %v2220 = vmul.f32 %v2060, %v2195
          %v2221 = vmul.f32 %v2061, %v2195
          %v2222 = vmul.f32 %v2062, %v2196
          %v2223 = vmul.f32 %v2063, %v2196
          %v2224 = vmul.f32 %v2064, %v2197
          %v2225 = vmul.f32 %v2065, %v2197
          %v2226 = vmul.f32 %v2066, %v2198
          %v2227 = vmul.f32 %v2067, %v2198
          %v2228 = vmul.f32 %v2068, %v2199
          %v2229 = vmul.f32 %v2069, %v2199
          %v2230 = vmul.f32 %v2070, %v2200
          %v2231 = vmul.f32 %v2071, %v2200
          %v2232 = vmul.f32 %v2072, %v2201
          %v2233 = vmul.f32 %v2073, %v2201
          %v2234 = vld [vmem:[%s7] sm:$0x3]
          %v2236 = vlaneseq
          %v2237 = vshrl.u32 %v2236, 7
          %v2238 = vsub.s32 0, %v2237
          %v2239 = vrot.slane %v2234, %v2238
          %v2240 = vlaneseq
          %v2241 = vshrl.u32 %v2240, 7
          %v2242 = vsub.s32 1, %v2241
          %v2243 = vrot.slane %v2234, %v2242
          %v2246 = vmul.f32 %v2202, %v2239
          %v2247 = vmul.f32 %v2203, %v2243
          %v2248 = vmul.f32 %v2204, %v2239
          %v2249 = vmul.f32 %v2205, %v2243
          %v2250 = vmul.f32 %v2206, %v2239
          %v2251 = vmul.f32 %v2207, %v2243
          %v2252 = vmul.f32 %v2208, %v2239
          %v2253 = vmul.f32 %v2209, %v2243
          %v2254 = vmul.f32 %v2210, %v2239
          %v2255 = vmul.f32 %v2211, %v2243
          %v2256 = vmul.f32 %v2212, %v2239
          %v2257 = vmul.f32 %v2213, %v2243
          %v2258 = vmul.f32 %v2214, %v2239
          %v2259 = vmul.f32 %v2215, %v2243
          %v2260 = vmul.f32 %v2216, %v2239
          %v2261 = vmul.f32 %v2217, %v2243
          %v2262 = vmul.f32 %v2218, %v2239
          %v2263 = vmul.f32 %v2219, %v2243
          %v2264 = vmul.f32 %v2220, %v2239
          %v2265 = vmul.f32 %v2221, %v2243
          %v2266 = vmul.f32 %v2222, %v2239
          %v2267 = vmul.f32 %v2223, %v2243
          %v2268 = vmul.f32 %v2224, %v2239
          %v2269 = vmul.f32 %v2225, %v2243
          %v2270 = vmul.f32 %v2226, %v2239
          %v2271 = vmul.f32 %v2227, %v2243
          %v2272 = vmul.f32 %v2228, %v2239
          %v2273 = vmul.f32 %v2229, %v2243
          %v2274 = vmul.f32 %v2230, %v2239
          %v2275 = vmul.f32 %v2231, %v2243
          %v2276 = vmul.f32 %v2232, %v2239
          %v2277 = vmul.f32 %v2233, %v2243
          %v2278 = vld [vmem:[%s8] sm:$0x3]
          %v2280 = vlaneseq
          %v2281 = vshrl.u32 %v2280, 7
          %v2282 = vsub.s32 0, %v2281
          %v2283 = vrot.slane %v2278, %v2282
          %v2284 = vlaneseq
          %v2285 = vshrl.u32 %v2284, 7
          %v2286 = vsub.s32 1, %v2285
          %v2287 = vrot.slane %v2278, %v2286
          %v2290 = vadd.f32 %v2246, %v2283
          %v2291 = vadd.f32 %v2247, %v2287
          %v2292 = vadd.f32 %v2248, %v2283
          %v2293 = vadd.f32 %v2249, %v2287
          %v2294 = vadd.f32 %v2250, %v2283
          %v2295 = vadd.f32 %v2251, %v2287
          %v2296 = vadd.f32 %v2252, %v2283
          %v2297 = vadd.f32 %v2253, %v2287
          %v2298 = vadd.f32 %v2254, %v2283
          %v2299 = vadd.f32 %v2255, %v2287
          %v2300 = vadd.f32 %v2256, %v2283
          %v2301 = vadd.f32 %v2257, %v2287
          %v2302 = vadd.f32 %v2258, %v2283
          %v2303 = vadd.f32 %v2259, %v2287
          %v2304 = vadd.f32 %v2260, %v2283
          %v2305 = vadd.f32 %v2261, %v2287
          %v2306 = vadd.f32 %v2262, %v2283
          %v2307 = vadd.f32 %v2263, %v2287
          %v2308 = vadd.f32 %v2264, %v2283
          %v2309 = vadd.f32 %v2265, %v2287
          %v2310 = vadd.f32 %v2266, %v2283
          %v2311 = vadd.f32 %v2267, %v2287
          %v2312 = vadd.f32 %v2268, %v2283
          %v2313 = vadd.f32 %v2269, %v2287
          %v2314 = vadd.f32 %v2270, %v2283
          %v2315 = vadd.f32 %v2271, %v2287
          %v2316 = vadd.f32 %v2272, %v2283
          %v2317 = vadd.f32 %v2273, %v2287
          %v2318 = vadd.f32 %v2274, %v2283
          %v2319 = vadd.f32 %v2275, %v2287
          %v2320 = vadd.f32 %v2276, %v2283
          %v2321 = vadd.f32 %v2277, %v2287
          %v2322 = vmul.f32 %v2290, %v2290
          %v2323 = vmul.f32 %v2291, %v2291
          %v2324 = vmul.f32 %v2292, %v2292
          %v2325 = vmul.f32 %v2293, %v2293
          %v2326 = vmul.f32 %v2294, %v2294
          %v2327 = vmul.f32 %v2295, %v2295
          %v2328 = vmul.f32 %v2296, %v2296
          %v2329 = vmul.f32 %v2297, %v2297
          %v2330 = vmul.f32 %v2298, %v2298
          %v2331 = vmul.f32 %v2299, %v2299
          %v2332 = vmul.f32 %v2300, %v2300
          %v2333 = vmul.f32 %v2301, %v2301
          %v2334 = vmul.f32 %v2302, %v2302
          %v2335 = vmul.f32 %v2303, %v2303
          %v2336 = vmul.f32 %v2304, %v2304
          %v2337 = vmul.f32 %v2305, %v2305
          %v2338 = vmul.f32 %v2306, %v2306
          %v2339 = vmul.f32 %v2307, %v2307
          %v2340 = vmul.f32 %v2308, %v2308
          %v2341 = vmul.f32 %v2309, %v2309
          %v2342 = vmul.f32 %v2310, %v2310
          %v2343 = vmul.f32 %v2311, %v2311
          %v2344 = vmul.f32 %v2312, %v2312
          %v2345 = vmul.f32 %v2313, %v2313
          %v2346 = vmul.f32 %v2314, %v2314
          %v2347 = vmul.f32 %v2315, %v2315
          %v2348 = vmul.f32 %v2316, %v2316
          %v2349 = vmul.f32 %v2317, %v2317
          %v2350 = vmul.f32 %v2318, %v2318
          %v2351 = vmul.f32 %v2319, %v2319
          %v2352 = vmul.f32 %v2320, %v2320
          %v2353 = vmul.f32 %v2321, %v2321
          %v2354 = vadd.f32 %v2322, %v2323
          %2355 = vadd.xlane.f32.xlu0 %v2354
          %v2356 = vpop.xlane.xlu0 %2355
          %v2357 = vadd.f32 %v2324, %v2325
          %2358 = vadd.xlane.f32.xlu0 %v2357
          %v2359 = vpop.xlane.xlu0 %2358
          %v2360 = vadd.f32 %v2326, %v2327
          %2361 = vadd.xlane.f32.xlu0 %v2360
          %v2362 = vpop.xlane.xlu0 %2361
          %v2363 = vadd.f32 %v2328, %v2329
          %2364 = vadd.xlane.f32.xlu0 %v2363
          %v2365 = vpop.xlane.xlu0 %2364
          %v2366 = vadd.f32 %v2330, %v2331
          %2367 = vadd.xlane.f32.xlu0 %v2366
          %v2368 = vpop.xlane.xlu0 %2367
          %v2369 = vadd.f32 %v2332, %v2333
          %2370 = vadd.xlane.f32.xlu0 %v2369
          %v2371 = vpop.xlane.xlu0 %2370
          %v2372 = vadd.f32 %v2334, %v2335
          %2373 = vadd.xlane.f32.xlu0 %v2372
          %v2374 = vpop.xlane.xlu0 %2373
          %v2375 = vadd.f32 %v2336, %v2337
          %2376 = vadd.xlane.f32.xlu0 %v2375
          %v2377 = vpop.xlane.xlu0 %2376
          %v2378 = vadd.f32 %v2338, %v2339
          %2379 = vadd.xlane.f32.xlu0 %v2378
          %v2380 = vpop.xlane.xlu0 %2379
          %v2381 = vadd.f32 %v2340, %v2341
          %2382 = vadd.xlane.f32.xlu0 %v2381
          %v2383 = vpop.xlane.xlu0 %2382
          %v2384 = vadd.f32 %v2342, %v2343
          %2385 = vadd.xlane.f32.xlu0 %v2384
          %v2386 = vpop.xlane.xlu0 %2385
          %v2387 = vadd.f32 %v2344, %v2345
          %2388 = vadd.xlane.f32.xlu0 %v2387
          %v2389 = vpop.xlane.xlu0 %2388
          %v2390 = vadd.f32 %v2346, %v2347
          %2391 = vadd.xlane.f32.xlu0 %v2390
          %v2392 = vpop.xlane.xlu0 %2391
          %v2393 = vadd.f32 %v2348, %v2349
          %2394 = vadd.xlane.f32.xlu0 %v2393
          %v2395 = vpop.xlane.xlu0 %2394
          %v2396 = vadd.f32 %v2350, %v2351
          %2397 = vadd.xlane.f32.xlu0 %v2396
          %v2398 = vpop.xlane.xlu0 %2397
          %v2399 = vadd.f32 %v2352, %v2353
          %2400 = vadd.xlane.f32.xlu0 %v2399
          %v2401 = vpop.xlane.xlu0 %2400
          %v2402 = vrsqrt.pop %v2356
          %v2403 = vmul.f32 %v2356, %v2402
          %vm2404 = vcmp.eq.f32.partialorder %v2356, inf
          %v2405 = vsel %vm2404, %v2356, %v2403
          %vm2406 = vcmp.eq.f32.partialorder %v2356, 0.0
          %v2407 = vand.u32 %v2356, 2147483648
          %v2408 = vsel %vm2406, %v2407, %v2405
          %v2409 = vrsqrt.pop %v2359
          %v2410 = vmul.f32 %v2359, %v2409
          %vm2411 = vcmp.eq.f32.partialorder %v2359, inf
          %v2412 = vsel %vm2411, %v2359, %v2410
          %vm2413 = vcmp.eq.f32.partialorder %v2359, 0.0
          %v2414 = vand.u32 %v2359, 2147483648
          %v2415 = vsel %vm2413, %v2414, %v2412
          %v2416 = vrsqrt.pop %v2362
          %v2417 = vmul.f32 %v2362, %v2416
          %vm2418 = vcmp.eq.f32.partialorder %v2362, inf
          %v2419 = vsel %vm2418, %v2362, %v2417
          %vm2420 = vcmp.eq.f32.partialorder %v2362, 0.0
          %v2421 = vand.u32 %v2362, 2147483648
          %v2422 = vsel %vm2420, %v2421, %v2419
          %v2423 = vrsqrt.pop %v2365
          %v2424 = vmul.f32 %v2365, %v2423
          %vm2425 = vcmp.eq.f32.partialorder %v2365, inf
          %v2426 = vsel %vm2425, %v2365, %v2424
          %vm2427 = vcmp.eq.f32.partialorder %v2365, 0.0
          %v2428 = vand.u32 %v2365, 2147483648
          %v2429 = vsel %vm2427, %v2428, %v2426
          %v2430 = vrsqrt.pop %v2368
          %v2431 = vmul.f32 %v2368, %v2430
          %vm2432 = vcmp.eq.f32.partialorder %v2368, inf
          %v2433 = vsel %vm2432, %v2368, %v2431
          %vm2434 = vcmp.eq.f32.partialorder %v2368, 0.0
          %v2435 = vand.u32 %v2368, 2147483648
          %v2436 = vsel %vm2434, %v2435, %v2433
          %v2437 = vrsqrt.pop %v2371
          %v2438 = vmul.f32 %v2371, %v2437
          %vm2439 = vcmp.eq.f32.partialorder %v2371, inf
          %v2440 = vsel %vm2439, %v2371, %v2438
          %vm2441 = vcmp.eq.f32.partialorder %v2371, 0.0
          %v2442 = vand.u32 %v2371, 2147483648
          %v2443 = vsel %vm2441, %v2442, %v2440
          %v2444 = vrsqrt.pop %v2374
          %v2445 = vmul.f32 %v2374, %v2444
          %vm2446 = vcmp.eq.f32.partialorder %v2374, inf
          %v2447 = vsel %vm2446, %v2374, %v2445
          %vm2448 = vcmp.eq.f32.partialorder %v2374, 0.0
          %v2449 = vand.u32 %v2374, 2147483648
          %v2450 = vsel %vm2448, %v2449, %v2447
          %v2451 = vrsqrt.pop %v2377
          %v2452 = vmul.f32 %v2377, %v2451
          %vm2453 = vcmp.eq.f32.partialorder %v2377, inf
          %v2454 = vsel %vm2453, %v2377, %v2452
          %vm2455 = vcmp.eq.f32.partialorder %v2377, 0.0
          %v2456 = vand.u32 %v2377, 2147483648
          %v2457 = vsel %vm2455, %v2456, %v2454
          %v2458 = vrsqrt.pop %v2380
          %v2459 = vmul.f32 %v2380, %v2458
          %vm2460 = vcmp.eq.f32.partialorder %v2380, inf
          %v2461 = vsel %vm2460, %v2380, %v2459
          %vm2462 = vcmp.eq.f32.partialorder %v2380, 0.0
          %v2463 = vand.u32 %v2380, 2147483648
          %v2464 = vsel %vm2462, %v2463, %v2461
          %v2465 = vrsqrt.pop %v2383
          %v2466 = vmul.f32 %v2383, %v2465
          %vm2467 = vcmp.eq.f32.partialorder %v2383, inf
          %v2468 = vsel %vm2467, %v2383, %v2466
          %vm2469 = vcmp.eq.f32.partialorder %v2383, 0.0
          %v2470 = vand.u32 %v2383, 2147483648
          %v2471 = vsel %vm2469, %v2470, %v2468
          %v2472 = vrsqrt.pop %v2386
          %v2473 = vmul.f32 %v2386, %v2472
          %vm2474 = vcmp.eq.f32.partialorder %v2386, inf
          %v2475 = vsel %vm2474, %v2386, %v2473
          %vm2476 = vcmp.eq.f32.partialorder %v2386, 0.0
          %v2477 = vand.u32 %v2386, 2147483648
          %v2478 = vsel %vm2476, %v2477, %v2475
          %v2479 = vrsqrt.pop %v2389
          %v2480 = vmul.f32 %v2389, %v2479
          %vm2481 = vcmp.eq.f32.partialorder %v2389, inf
          %v2482 = vsel %vm2481, %v2389, %v2480
          %vm2483 = vcmp.eq.f32.partialorder %v2389, 0.0
          %v2484 = vand.u32 %v2389, 2147483648
          %v2485 = vsel %vm2483, %v2484, %v2482
          %v2486 = vrsqrt.pop %v2392
          %v2487 = vmul.f32 %v2392, %v2486
          %vm2488 = vcmp.eq.f32.partialorder %v2392, inf
          %v2489 = vsel %vm2488, %v2392, %v2487
          %vm2490 = vcmp.eq.f32.partialorder %v2392, 0.0
          %v2491 = vand.u32 %v2392, 2147483648
          %v2492 = vsel %vm2490, %v2491, %v2489
          %v2493 = vrsqrt.pop %v2395
          %v2494 = vmul.f32 %v2395, %v2493
          %vm2495 = vcmp.eq.f32.partialorder %v2395, inf
          %v2496 = vsel %vm2495, %v2395, %v2494
          %vm2497 = vcmp.eq.f32.partialorder %v2395, 0.0
          %v2498 = vand.u32 %v2395, 2147483648
          %v2499 = vsel %vm2497, %v2498, %v2496
          %v2500 = vrsqrt.pop %v2398
          %v2501 = vmul.f32 %v2398, %v2500
          %vm2502 = vcmp.eq.f32.partialorder %v2398, inf
          %v2503 = vsel %vm2502, %v2398, %v2501
          %vm2504 = vcmp.eq.f32.partialorder %v2398, 0.0
          %v2505 = vand.u32 %v2398, 2147483648
          %v2506 = vsel %vm2504, %v2505, %v2503
          %v2507 = vrsqrt.pop %v2401
          %v2508 = vmul.f32 %v2401, %v2507
          %vm2509 = vcmp.eq.f32.partialorder %v2401, inf
          %v2510 = vsel %vm2509, %v2401, %v2508
          %vm2511 = vcmp.eq.f32.partialorder %v2401, 0.0
          %v2512 = vand.u32 %v2401, 2147483648
          %v2513 = vsel %vm2511, %v2512, %v2510
          %v2514 = vmax.f32 %v2408, 1e-12
          %v2515 = vmax.f32 %v2415, 1e-12
          %v2516 = vmax.f32 %v2422, 1e-12
          %v2517 = vmax.f32 %v2429, 1e-12
          %v2518 = vmax.f32 %v2436, 1e-12
          %v2519 = vmax.f32 %v2443, 1e-12
          %v2520 = vmax.f32 %v2450, 1e-12
          %v2521 = vmax.f32 %v2457, 1e-12
          %v2522 = vmax.f32 %v2464, 1e-12
          %v2523 = vmax.f32 %v2471, 1e-12
          %v2524 = vmax.f32 %v2478, 1e-12
          %v2525 = vmax.f32 %v2485, 1e-12
          %v2526 = vmax.f32 %v2492, 1e-12
          %v2527 = vmax.f32 %v2499, 1e-12
          %v2528 = vmax.f32 %v2506, 1e-12
          %v2529 = vmax.f32 %v2513, 1e-12
          %v2530 = vrcp.pop %v2514
          %v2531 = vmul.f32 %v2290, %v2530
          %v2532 = vmul.f32 %v2291, %v2530
          %v2533 = vrcp.pop %v2515
          %v2534 = vmul.f32 %v2292, %v2533
          %v2535 = vmul.f32 %v2293, %v2533
          %v2536 = vrcp.pop %v2516
          %v2537 = vmul.f32 %v2294, %v2536
          %v2538 = vmul.f32 %v2295, %v2536
          %v2539 = vrcp.pop %v2517
          %v2540 = vmul.f32 %v2296, %v2539
          %v2541 = vmul.f32 %v2297, %v2539
          %v2542 = vrcp.pop %v2518
          %v2543 = vmul.f32 %v2298, %v2542
          %v2544 = vmul.f32 %v2299, %v2542
          %v2545 = vrcp.pop %v2519
          %v2546 = vmul.f32 %v2300, %v2545
          %v2547 = vmul.f32 %v2301, %v2545
          %v2548 = vrcp.pop %v2520
          %v2549 = vmul.f32 %v2302, %v2548
          %v2550 = vmul.f32 %v2303, %v2548
          %v2551 = vrcp.pop %v2521
          %v2552 = vmul.f32 %v2304, %v2551
          %v2553 = vmul.f32 %v2305, %v2551
          %v2554 = vrcp.pop %v2522
          %v2555 = vmul.f32 %v2306, %v2554
          %v2556 = vmul.f32 %v2307, %v2554
          %v2557 = vrcp.pop %v2523
          %v2558 = vmul.f32 %v2308, %v2557
          %v2559 = vmul.f32 %v2309, %v2557
          %v2560 = vrcp.pop %v2524
          %v2561 = vmul.f32 %v2310, %v2560
          %v2562 = vmul.f32 %v2311, %v2560
          %v2563 = vrcp.pop %v2525
          %v2564 = vmul.f32 %v2312, %v2563
          %v2565 = vmul.f32 %v2313, %v2563
          %v2566 = vrcp.pop %v2526
          %v2567 = vmul.f32 %v2314, %v2566
          %v2568 = vmul.f32 %v2315, %v2566
          %v2569 = vrcp.pop %v2527
          %v2570 = vmul.f32 %v2316, %v2569
          %v2571 = vmul.f32 %v2317, %v2569
          %v2572 = vrcp.pop %v2528
          %v2573 = vmul.f32 %v2318, %v2572
          %v2574 = vmul.f32 %v2319, %v2572
          %v2575 = vrcp.pop %v2529
          %v2576 = vmul.f32 %v2320, %v2575
          %v2577 = vmul.f32 %v2321, %v2575
          %2578 = vst [vmem:[%s552] sm:$0xff] %v2531
          %2579 = vst [vmem:[%s552 + $0x8] sm:$0xff] %v2532
          %2580 = vst [vmem:[%s552 + $0x10] sm:$0xff] %v2534
          %2581 = vst [vmem:[%s552 + $0x18] sm:$0xff] %v2535
          %2582 = vst [vmem:[%s552 + $0x20] sm:$0xff] %v2537
          %2583 = vst [vmem:[%s552 + $0x28] sm:$0xff] %v2538
          %2584 = vst [vmem:[%s552 + $0x30] sm:$0xff] %v2540
          %2585 = vst [vmem:[%s552 + $0x38] sm:$0xff] %v2541
          %2586 = vst [vmem:[%s552 + $0x40] sm:$0xff] %v2543
          %2587 = vst [vmem:[%s552 + $0x48] sm:$0xff] %v2544
          %2588 = vst [vmem:[%s552 + $0x50] sm:$0xff] %v2546
          %2589 = vst [vmem:[%s552 + $0x58] sm:$0xff] %v2547
          %2590 = vst [vmem:[%s552 + $0x60] sm:$0xff] %v2549
          %2591 = vst [vmem:[%s552 + $0x68] sm:$0xff] %v2550
          %2592 = vst [vmem:[%s552 + $0x70] sm:$0xff] %v2552
          %2593 = vst [vmem:[%s552 + $0x78] sm:$0xff] %v2553
          %2594 = vst [vmem:[%s552 + $0x80] sm:$0xff] %v2555
          %2595 = vst [vmem:[%s552 + $0x88] sm:$0xff] %v2556
          %2596 = vst [vmem:[%s552 + $0x90] sm:$0xff] %v2558
          %2597 = vst [vmem:[%s552 + $0x98] sm:$0xff] %v2559
          %2598 = vst [vmem:[%s552 + $0xa0] sm:$0xff] %v2561
          %2599 = vst [vmem:[%s552 + $0xa8] sm:$0xff] %v2562
          %2600 = vst [vmem:[%s552 + $0xb0] sm:$0xff] %v2564
          %2601 = vst [vmem:[%s552 + $0xb8] sm:$0xff] %v2565
          %2602 = vst [vmem:[%s552 + $0xc0] sm:$0xff] %v2567
          %2603 = vst [vmem:[%s552 + $0xc8] sm:$0xff] %v2568
          %2604 = vst [vmem:[%s552 + $0xd0] sm:$0xff] %v2570
          %2605 = vst [vmem:[%s552 + $0xd8] sm:$0xff] %v2571
          %2606 = vst [vmem:[%s552 + $0xe0] sm:$0xff] %v2573
          %2607 = vst [vmem:[%s552 + $0xe8] sm:$0xff] %v2574
          %2608 = vst [vmem:[%s552 + $0xf0] sm:$0xff] %v2576
          %2609 = vst [vmem:[%s552 + $0xf8] sm:$0xff] %v2577
        $region102: #{retrieval_head.1} parent=89 // pred_fallthru
          _
        %s2610 = sand.u32 %s252, 1
        %s2611 = scalar_lea.sflag [#allocation6], %s2610
        %s2612 = sand.u32 %s252, 1
        %s2613 = smul.addr %s2612, 256
        %s2614 = scalar_lea.vmem [#allocation5], %s2613
        // Predicated region
        $region103: #{retrieval_head.1} parent=89 // pred_check
          %p2615 = pneg %p262
        $region104: #{retrieval_head.1} parent=89 // pred_check_branch
          %2617 = sbr.rel (%p2615) target = $region106
        $region105: #{retrieval_head.1} parent=89 // pred_region
          %s2618 = smul.u32 16, %s27
          %s2620 = ssub.s32 4096, 4096
          %2621 = vsyncadd %s2611, %s2620
          %s2622 = smul.addr %s2618, 2
          %s2623 = smul.addr %s2622, 128
          %s2624 = scalar_lea.hbm %s9, %s2623
          %s2625 = sshll.u32 %s2614, 4
          %s2626 = int_to_ptr.vmem [resolvable:$true] %s2625
          %2631 = dma.vmem_to_hbm [thread:$0]  %s2626, 4096, %s2624, %s2611, 256, 256, 16
        $region106: #{retrieval_head.1} parent=89 // pred_fallthru
          _
      $region90: #{retrieval_head.1} parent=5 // pred_fallthru
        _
      %p2632 = scmp.le.s32.totalorder 2, %s18
      // Predicated region
      $region107: #{retrieval_head.1} parent=5 // pred_check
        %p2633 = pneg %p2632
      $region108: #{retrieval_head.1} parent=5 // pred_check_branch
        %2635 = sbr.rel (%p2633) target = $region110
      $region109: #{retrieval_head.1} parent=5 // pred_region
        %s2636 = ssub.s32 %s18, 2
        // Predicated region
        $region111: #{retrieval_head.1} parent=109 // pred_check
          %p2637 = pneg %p268
        $region112: #{retrieval_head.1} parent=109 // pred_check_branch
          %2639 = sbr.rel (%p2637) target = $region114
        $region113: #{retrieval_head.1} parent=109 // pred_region
          %s2640 = sand.u32 %s253, 1
          %s2641 = scalar_lea.sflag [#allocation6], %s2640
          %s2642 = sand.u32 %s253, 1
          %s2643 = smul.addr %s2642, 256
          %s2644 = scalar_lea.vmem [#allocation5], %s2643
          %2645 = dma.done %s2641, 4096
        $region114: #{retrieval_head.1} parent=109 // pred_fallthru
          _
      $region110: #{retrieval_head.1} parent=5 // pred_fallthru
        _
    $region6: #{retrieval_head.1} parent=1 // loop_footer
      %s22 = sadd.s32 1, %s18
    $region7: #{retrieval_head.1} parent=1 // loop_footer_branch
      %17 = sbr.rel target = $region3
    $region8: #{retrieval_head.1} parent=1 // loop_exit
      _
    %2646 = vsyncpa [#allocation6], 1
    %s2647 = scalar_lea.sflag [#allocation6], 1
    %2648 = vsyncpa %s2647, 1

</llo_original>
